<compile_context>
chip_gen: v7x
topology: tpu7x:2x2x1
jax: 0.10.0
libtpu: 0.0.40
codegen_flags: <defaults>
</compile_context>

<pallas_src>
import jax
import jax.numpy as jnp
import numpy as np
from jax.experimental import pallas as pl
from jax.experimental.pallas import tpu as pltpu


def _layer_norm(x, gamma, beta, eps=1e-5):
    mu = jnp.mean(x, axis=-1, keepdims=True)
    var = jnp.mean(jnp.square(x - mu), axis=-1, keepdims=True)
    return (x - mu) * jax.lax.rsqrt(var + eps) * gamma + beta


def _head_softmax(x, head_mask):
    """Softmax over each head's contiguous d-lane segment of a (R, D) array.

    Stays at full lane width: a global row max (a per-row shift is valid for every
    segment), one full-width exp (EUP), and the per-segment denominator via a single
    (R, D) x (D, D) matmul with the 0/1 block-diagonal head mask (MXU).
    """
    m = jnp.max(x, axis=-1, keepdims=True)
    e = jnp.exp(x - m)
    denom = jnp.dot(e, head_mask, preferred_element_type=jnp.float32)
    return e * pl.reciprocal(denom, approx=True)


def eca_kernel(x1_ref, x2_ref, mask_ref,
               wq_ref, bq_ref, wk_ref, bk_ref, wv_ref, bv_ref, wh_ref, bh_ref,
               g1_ref, be1_ref, g2_ref, be2_ref,
               o_ref, attn_ref):
    t = pl.program_id(1)
    mask = mask_ref[...]                      # (D, D) f32 block-diagonal head mask

    # ---- x2 side: depends only on x2 -> compute once per batch, cache in VMEM.
    @pl.when(t == 0)
    def _():
        x2 = x2_ref[0]                                              # (N, L) f32
        nx2 = _layer_norm(x2, g2_ref[...], be2_ref[...])
        nx2b = nx2.astype(jnp.bfloat16)
        k = jnp.dot(nx2b, wk_ref[...],
                    preferred_element_type=jnp.float32) + bk_ref[...]   # (N, D)
        v = jnp.dot(nx2b, wv_ref[...],
                    preferred_element_type=jnp.float32) + bv_ref[...]   # (N, D)
        k_soft = _head_softmax(k, mask)                              # (N, D) f32
        # Full cross-head A = K_soft^T @ V (contract over N); keeping only the
        # diagonal d x d blocks == einsum('nhd,nhl->hdl', k, v) laid out as (D, D).
        a = jax.lax.dot_general(
            k_soft.astype(jnp.bfloat16), v.astype(jnp.bfloat16),
            (((0,), (0,)), ((), ())), preferred_element_type=jnp.float32)
        attn_ref[...] = (a * mask).astype(attn_ref.dtype)

    # ---- x1 side: one T tile per grid step, reusing the cached attention.
    x1 = x1_ref[0]                                                  # (tT, D) f32
    nx1 = _layer_norm(x1, g1_ref[...], be1_ref[...])
    q = jnp.dot(nx1.astype(jnp.bfloat16), wq_ref[...],
                preferred_element_type=jnp.float32) + bq_ref[...]    # (tT, D)
    q_soft = _head_softmax(q, mask)
    # y = einsum('thd,hdl->thl', q_soft, attn)  ==  q_soft @ attn_masked
    y = jnp.dot(q_soft.astype(jnp.bfloat16), attn_ref[...],
                preferred_element_type=jnp.float32)
    hw = jnp.dot(x1.astype(jnp.bfloat16), wh_ref[...],
                 preferred_element_type=jnp.float32) + bh_ref[...]   # highway(x1)
    o_ref[0] = (hw + y).astype(o_ref.dtype)


_MATMUL_WEIGHTS = ('wq', 'wk', 'wv', 'wh')
_WEIGHT_ORDER = ('wq', 'bq', 'wk', 'bk', 'wv', 'bv', 'wh', 'bh',
                 'ln1_g', 'ln1_b', 'ln2_g', 'ln2_b')


def _head_block_mask(D, nhead):
    head_of = np.arange(D) // (D // nhead)
    return jnp.asarray((head_of[:, None] == head_of[None, :]).astype(np.float32))


def eca_forward(x1, x2, params, nhead, tile_t=None):
    B, T, D = x1.shape
    _, N, L = x2.shape
    assert D % nhead == 0, "embed_dim must be divisible by nhead"

    if tile_t is None:
        # Full T if small, else stream 512-row tiles (multiple of 8 -> satisfies the
        # sublane rule; sized so double-buffered x1/out tiles fit v7x's 64 MiB VMEM).
        tile_t = T if T <= 512 else 512
    nt = pl.cdiv(T, tile_t)

    mask = _head_block_mask(D, nhead)

    args = [x1, x2, mask]
    for name in _WEIGHT_ORDER:
        w = params[name]
        if name in _MATMUL_WEIGHTS:
            w = w.astype(jnp.bfloat16)   # bf16 MXU operands, half the HBM weight traffic
        args.append(w)

    def const_spec(arr):
        nd = arr.ndim
        return pl.BlockSpec(arr.shape, lambda b, t, _nd=nd: (0,) * _nd)

    in_specs = [
        pl.BlockSpec((1, tile_t, D), lambda b, t: (b, t, 0)),   # x1, streamed over T
        pl.BlockSpec((1, N, L), lambda b, t: (b, 0, 0)),        # x2, fetched per batch
    ] + [const_spec(a) for a in args[2:]]                       # mask + weights, resident

    return pl.pallas_call(
        eca_kernel,
        out_shape=jax.ShapeDtypeStruct((B, T, D), x1.dtype),
        grid=(B, nt),
        in_specs=in_specs,
        out_specs=pl.BlockSpec((1, tile_t, D), lambda b, t: (b, t, 0)),
        scratch_shapes=[pltpu.VMEM((D, D), jnp.bfloat16)],      # cached masked attention
        compiler_params=pltpu.CompilerParams(
            dimension_semantics=("parallel", "arbitrary"),
            vmem_limit_bytes=64 * 1024 * 1024),
    )(*args)


def init_params(key, embed_dim, cond_dim):
    ks = jax.random.split(key, 14)
    s = 0.05
    f32 = jnp.float32
    return {
        'wq': jax.random.normal(ks[0], (embed_dim, embed_dim), f32) * s,
        'bq': jax.random.normal(ks[1], (1, embed_dim), f32) * s,
        'wk': jax.random.normal(ks[2], (cond_dim, embed_dim), f32) * s,
        'bk': jax.random.normal(ks[3], (1, embed_dim), f32) * s,
        'wv': jax.random.normal(ks[4], (cond_dim, embed_dim), f32) * s,
        'bv': jax.random.normal(ks[5], (1, embed_dim), f32) * s,
        'wh': jax.random.normal(ks[6], (embed_dim, embed_dim), f32) * s,
        'bh': jax.random.normal(ks[7], (1, embed_dim), f32) * s,
        # non-trivial LayerNorm affine params so the affine path is actually tested
        'ln1_g': 1.0 + 0.1 * jax.random.normal(ks[8], (1, embed_dim), f32),
        'ln1_b': 0.1 * jax.random.normal(ks[9], (1, embed_dim), f32),
        'ln2_g': 1.0 + 0.1 * jax.random.normal(ks[10], (1, cond_dim), f32),
        'ln2_b': 0.1 * jax.random.normal(ks[11], (1, cond_dim), f32),
    }


def reference_forward(x1, x2, p, nhead):
    """Pure-JAX reference mirroring the PyTorch EfficientCrossAttention.forward."""
    def ln(x, g, b):
        mu = x.mean(-1, keepdims=True)
        var = ((x - mu) ** 2).mean(-1, keepdims=True)
        return (x - mu) / jnp.sqrt(var + 1e-5) * g + b

    B, T, D = x1.shape
    N = x2.shape[1]
    d = D // nhead
    nx1 = ln(x1, p['ln1_g'], p['ln1_b'])
    nx2 = ln(x2, p['ln2_g'], p['ln2_b'])
    q = (nx1 @ p['wq'] + p['bq']).reshape(B, T, nhead, d)
    k = (nx2 @ p['wk'] + p['bk']).reshape(B, N, nhead, d)
    v = (nx2 @ p['wv'] + p['bv']).reshape(B, N, nhead, d)
    q = jax.nn.softmax(q, axis=-1)
    k = jax.nn.softmax(k, axis=-1)
    attn = jnp.einsum('bnhd,bnhl->bhdl', k, v)          # dropout = identity (eval)
    y = jnp.einsum('bthd,bhdl->bthl', q, attn).reshape(B, T, D)
    return x1 @ p['wh'] + p['bh'] + y


if __name__ == "__main__":
    B, T, N = 2, 8, 8
    embed_dim, cond_dim, nhead = 32, 24, 4

    key = jax.random.PRNGKey(0)
    k1, k2, kp = jax.random.split(key, 3)
    x1 = jax.random.normal(k1, (B, T, embed_dim), jnp.float32)
    x2 = jax.random.normal(k2, (B, N, cond_dim), jnp.float32)
    params = init_params(kp, embed_dim, cond_dim)

    out = jax.block_until_ready(eca_forward(x1, x2, params, nhead))
    ref = jax.block_until_ready(reference_forward(x1, x2, params, nhead))

    np.testing.assert_allclose(np.asarray(out), np.asarray(ref),
                               rtol=2e-2, atol=2e-2)
    print("KERNEL_OK")
</pallas_src>

<mosaic_0001>
module attributes {stable_mosaic.version = 11 : i64} {
  func.func @eca_kernel(%arg0: i32, %arg1: i32, %arg2: memref<1x8x32xf32, #tpu.memory_space<vmem>>, %arg3: memref<1x8x24xf32, #tpu.memory_space<vmem>>, %arg4: memref<32x32xf32, #tpu.memory_space<vmem>>, %arg5: memref<32x32xbf16, #tpu.memory_space<vmem>>, %arg6: memref<1x32xf32, #tpu.memory_space<vmem>>, %arg7: memref<24x32xbf16, #tpu.memory_space<vmem>>, %arg8: memref<1x32xf32, #tpu.memory_space<vmem>>, %arg9: memref<24x32xbf16, #tpu.memory_space<vmem>>, %arg10: memref<1x32xf32, #tpu.memory_space<vmem>>, %arg11: memref<32x32xbf16, #tpu.memory_space<vmem>>, %arg12: memref<1x32xf32, #tpu.memory_space<vmem>>, %arg13: memref<1x32xf32, #tpu.memory_space<vmem>>, %arg14: memref<1x32xf32, #tpu.memory_space<vmem>>, %arg15: memref<1x24xf32, #tpu.memory_space<vmem>>, %arg16: memref<1x24xf32, #tpu.memory_space<vmem>>, %arg17: memref<1x8x32xf32, #tpu.memory_space<vmem>>, %arg18: memref<32x32xbf16, #tpu.memory_space<vmem>>) attributes {dimension_semantics = [#tpu.dimension_semantics<parallel>, #tpu.dimension_semantics<arbitrary>], iteration_bounds = array<i64: 2, 1>, scalar_prefetch = 0 : i64, scratch_operands = 1 : i64, tpu.core_type = #tpu.core_type<tc>, window_params = [{transform_indices = @transform_0, window_bounds = array<i64: 1, 8, 32>}, {transform_indices = @transform_1, window_bounds = array<i64: 1, 8, 24>}, {pipeline_mode = #tpu.pipeline_mode<synchronous>, transform_indices = @transform_2, window_bounds = array<i64: 32, 32>}, {pipeline_mode = #tpu.pipeline_mode<synchronous>, transform_indices = @transform_3, window_bounds = array<i64: 32, 32>}, {pipeline_mode = #tpu.pipeline_mode<synchronous>, transform_indices = @transform_4, window_bounds = array<i64: 1, 32>}, {pipeline_mode = #tpu.pipeline_mode<synchronous>, transform_indices = @transform_5, window_bounds = array<i64: 24, 32>}, {pipeline_mode = #tpu.pipeline_mode<synchronous>, transform_indices = @transform_6, window_bounds = array<i64: 1, 32>}, {pipeline_mode = #tpu.pipeline_mode<synchronous>, transform_indices = @transform_7, window_bounds = array<i64: 24, 32>}, {pipeline_mode = #tpu.pipeline_mode<synchronous>, transform_indices = @transform_8, window_bounds = array<i64: 1, 32>}, {pipeline_mode = #tpu.pipeline_mode<synchronous>, transform_indices = @transform_9, window_bounds = array<i64: 32, 32>}, {pipeline_mode = #tpu.pipeline_mode<synchronous>, transform_indices = @transform_10, window_bounds = array<i64: 1, 32>}, {pipeline_mode = #tpu.pipeline_mode<synchronous>, transform_indices = @transform_11, window_bounds = array<i64: 1, 32>}, {pipeline_mode = #tpu.pipeline_mode<synchronous>, transform_indices = @transform_12, window_bounds = array<i64: 1, 32>}, {pipeline_mode = #tpu.pipeline_mode<synchronous>, transform_indices = @transform_13, window_bounds = array<i64: 1, 24>}, {pipeline_mode = #tpu.pipeline_mode<synchronous>, transform_indices = @transform_14, window_bounds = array<i64: 1, 24>}, {transform_indices = @transform_15, window_bounds = array<i64: 1, 8, 32>}]} {
    %c0 = arith.constant 0 : index
    %c0_0 = arith.constant 0 : index
    %0 = vector.load %arg4[%c0, %c0_0] : memref<32x32xf32, #tpu.memory_space<vmem>>, vector<32x32xf32>
    %c0_i32 = arith.constant 0 : i32
    %1 = arith.cmpi eq, %arg1, %c0_i32 : i32
    %2 = arith.extui %1 : i1 to i32
    %c0_i32_1 = arith.constant 0 : i32
    %3 = arith.cmpi ne, %2, %c0_i32_1 : i32
    scf.if %3 {
      %c0_31 = arith.constant 0 : index
      %c0_32 = arith.constant 0 : index
      %c0_33 = arith.constant 0 : index
      %57 = vector.load %arg3[%c0_31, %c0_32, %c0_33] : memref<1x8x24xf32, #tpu.memory_space<vmem>>, vector<1x8x24xf32>
      %58 = vector.shape_cast %57 : vector<1x8x24xf32> to vector<8x24xf32>
      %c0_34 = arith.constant 0 : index
      %c0_35 = arith.constant 0 : index
      %59 = vector.load %arg15[%c0_34, %c0_35] : memref<1x24xf32, #tpu.memory_space<vmem>>, vector<1x24xf32>
      %c0_36 = arith.constant 0 : index
      %c0_37 = arith.constant 0 : index
      %60 = vector.load %arg16[%c0_36, %c0_37] : memref<1x24xf32, #tpu.memory_space<vmem>>, vector<1x24xf32>
      %cst_38 = arith.constant dense<0.000000e+00> : vector<8xf32>
      %61 = vector.multi_reduction <add>, %58, %cst_38 [1] : vector<8x24xf32> to vector<8xf32>
      %62 = vector.shape_cast %61 : vector<8xf32> to vector<8x1xf32>
      %cst_39 = arith.constant 2.400000e+01 : f32
      %63 = vector.broadcast %cst_39 : f32 to vector<8x1xf32>
      %64 = arith.divf %62, %63 : vector<8x1xf32>
      %65 = vector.broadcast %64 : vector<8x1xf32> to vector<8x24xf32>
      %66 = arith.subf %58, %65 : vector<8x24xf32>
      %67 = arith.mulf %66, %66 : vector<8x24xf32>
      %cst_40 = arith.constant dense<0.000000e+00> : vector<8xf32>
      %68 = vector.multi_reduction <add>, %67, %cst_40 [1] : vector<8x24xf32> to vector<8xf32>
      %69 = vector.shape_cast %68 : vector<8xf32> to vector<8x1xf32>
      %cst_41 = arith.constant 2.400000e+01 : f32
      %70 = vector.broadcast %cst_41 : f32 to vector<8x1xf32>
      %71 = arith.divf %69, %70 : vector<8x1xf32>
      %72 = vector.broadcast %64 : vector<8x1xf32> to vector<8x24xf32>
      %73 = arith.subf %58, %72 : vector<8x24xf32>
      %cst_42 = arith.constant 9.99999974E-6 : f32
      %74 = vector.broadcast %cst_42 : f32 to vector<8x1xf32>
      %75 = arith.addf %71, %74 : vector<8x1xf32>
      %76 = math.rsqrt %75 : vector<8x1xf32>
      %77 = vector.broadcast %76 : vector<8x1xf32> to vector<8x24xf32>
      %78 = arith.mulf %73, %77 : vector<8x24xf32>
      %79 = vector.broadcast %59 : vector<1x24xf32> to vector<8x24xf32>
      %80 = arith.mulf %78, %79 : vector<8x24xf32>
      %81 = vector.broadcast %60 : vector<1x24xf32> to vector<8x24xf32>
      %82 = arith.addf %80, %81 : vector<8x24xf32>
      %83 = arith.truncf %82 : vector<8x24xf32> to vector<8x24xbf16>
      %c0_43 = arith.constant 0 : index
      %c0_44 = arith.constant 0 : index
      %84 = vector.load %arg7[%c0_43, %c0_44] : memref<24x32xbf16, #tpu.memory_space<vmem>>, vector<24x32xbf16>
      %cst_45 = arith.constant dense<0.000000e+00> : vector<8x32xf32>
      %85 = tpu.matmul %83, %84, %cst_45 {dimension_numbers = #tpu.dot_dimension_numbers<[1], [0], [0], [1], [0, 0, 1, 1], [], []>} : vector<8x24xbf16>, vector<24x32xbf16>, vector<8x32xf32> -> vector<8x32xf32>
      %c0_46 = arith.constant 0 : index
      %c0_47 = arith.constant 0 : index
      %86 = vector.load %arg8[%c0_46, %c0_47] : memref<1x32xf32, #tpu.memory_space<vmem>>, vector<1x32xf32>
      %87 = vector.broadcast %86 : vector<1x32xf32> to vector<8x32xf32>
      %88 = arith.addf %85, %87 : vector<8x32xf32>
      %c0_48 = arith.constant 0 : index
      %c0_49 = arith.constant 0 : index
      %89 = vector.load %arg9[%c0_48, %c0_49] : memref<24x32xbf16, #tpu.memory_space<vmem>>, vector<24x32xbf16>
      %cst_50 = arith.constant dense<0.000000e+00> : vector<8x32xf32>
      %90 = tpu.matmul %83, %89, %cst_50 {dimension_numbers = #tpu.dot_dimension_numbers<[1], [0], [0], [1], [0, 0, 1, 1], [], []>} : vector<8x24xbf16>, vector<24x32xbf16>, vector<8x32xf32> -> vector<8x32xf32>
      %c0_51 = arith.constant 0 : index
      %c0_52 = arith.constant 0 : index
      %91 = vector.load %arg10[%c0_51, %c0_52] : memref<1x32xf32, #tpu.memory_space<vmem>>, vector<1x32xf32>
      %92 = vector.broadcast %91 : vector<1x32xf32> to vector<8x32xf32>
      %93 = arith.addf %90, %92 : vector<8x32xf32>
      %cst_53 = arith.constant dense<0xFF800000> : vector<8xf32>
      %94 = vector.multi_reduction <maximumf>, %88, %cst_53 [1] : vector<8x32xf32> to vector<8xf32>
      %95 = vector.shape_cast %94 : vector<8xf32> to vector<8x1xf32>
      %96 = vector.broadcast %95 : vector<8x1xf32> to vector<8x32xf32>
      %97 = arith.subf %88, %96 : vector<8x32xf32>
      %98 = math.exp %97 : vector<8x32xf32>
      %cst_54 = arith.constant dense<0.000000e+00> : vector<8x32xf32>
      %99 = tpu.matmul %98, %0, %cst_54 {dimension_numbers = #tpu.dot_dimension_numbers<[1], [0], [0], [1], [0, 0, 1, 1], [], []>} : vector<8x32xf32>, vector<32x32xf32>, vector<8x32xf32> -> vector<8x32xf32>
      %100 = tpu.reciprocal %99 {approx = true} : vector<8x32xf32> -> vector<8x32xf32>
      %101 = arith.mulf %98, %100 : vector<8x32xf32>
      %102 = arith.truncf %101 : vector<8x32xf32> to vector<8x32xbf16>
      %103 = arith.truncf %93 : vector<8x32xf32> to vector<8x32xbf16>
      %cst_55 = arith.constant dense<0.000000e+00> : vector<32x32xf32>
      %104 = tpu.matmul %102, %103, %cst_55 {dimension_numbers = #tpu.dot_dimension_numbers<[0], [0], [1], [1], [0, 1, 1, 1], [], []>} : vector<8x32xbf16>, vector<8x32xbf16>, vector<32x32xf32> -> vector<32x32xf32>
      %105 = arith.mulf %104, %0 : vector<32x32xf32>
      %106 = arith.truncf %105 : vector<32x32xf32> to vector<32x32xbf16>
      %c0_56 = arith.constant 0 : index
      %c0_57 = arith.constant 0 : index
      %107 = vector.load %arg18[%c0_56, %c0_57] : memref<32x32xbf16, #tpu.memory_space<vmem>>, vector<32x32xbf16>
      tpu.vector_store %arg18[%c0_56, %c0_57], %106 {strides = array<i32>} : memref<32x32xbf16, #tpu.memory_space<vmem>>, vector<32x32xbf16>,
    } else {
    }
    %c0_2 = arith.constant 0 : index
    %c0_3 = arith.constant 0 : index
    %c0_4 = arith.constant 0 : index
    %4 = vector.load %arg2[%c0_2, %c0_3, %c0_4] : memref<1x8x32xf32, #tpu.memory_space<vmem>>, vector<1x8x32xf32>
    %5 = vector.shape_cast %4 : vector<1x8x32xf32> to vector<8x32xf32>
    %c0_5 = arith.constant 0 : index
    %c0_6 = arith.constant 0 : index
    %6 = vector.load %arg13[%c0_5, %c0_6] : memref<1x32xf32, #tpu.memory_space<vmem>>, vector<1x32xf32>
    %c0_7 = arith.constant 0 : index
    %c0_8 = arith.constant 0 : index
    %7 = vector.load %arg14[%c0_7, %c0_8] : memref<1x32xf32, #tpu.memory_space<vmem>>, vector<1x32xf32>
    %cst = arith.constant dense<0.000000e+00> : vector<8xf32>
    %8 = vector.multi_reduction <add>, %5, %cst [1] : vector<8x32xf32> to vector<8xf32>
    %9 = vector.shape_cast %8 : vector<8xf32> to vector<8x1xf32>
    %cst_9 = arith.constant 3.200000e+01 : f32
    %10 = vector.broadcast %cst_9 : f32 to vector<8x1xf32>
    %11 = arith.divf %9, %10 : vector<8x1xf32>
    %12 = vector.broadcast %11 : vector<8x1xf32> to vector<8x32xf32>
    %13 = arith.subf %5, %12 : vector<8x32xf32>
    %14 = arith.mulf %13, %13 : vector<8x32xf32>
    %cst_10 = arith.constant dense<0.000000e+00> : vector<8xf32>
    %15 = vector.multi_reduction <add>, %14, %cst_10 [1] : vector<8x32xf32> to vector<8xf32>
    %16 = vector.shape_cast %15 : vector<8xf32> to vector<8x1xf32>
    %cst_11 = arith.constant 3.200000e+01 : f32
    %17 = vector.broadcast %cst_11 : f32 to vector<8x1xf32>
    %18 = arith.divf %16, %17 : vector<8x1xf32>
    %19 = vector.broadcast %11 : vector<8x1xf32> to vector<8x32xf32>
    %20 = arith.subf %5, %19 : vector<8x32xf32>
    %cst_12 = arith.constant 9.99999974E-6 : f32
    %21 = vector.broadcast %cst_12 : f32 to vector<8x1xf32>
    %22 = arith.addf %18, %21 : vector<8x1xf32>
    %23 = math.rsqrt %22 : vector<8x1xf32>
    %24 = vector.broadcast %23 : vector<8x1xf32> to vector<8x32xf32>
    %25 = arith.mulf %20, %24 : vector<8x32xf32>
    %26 = vector.broadcast %6 : vector<1x32xf32> to vector<8x32xf32>
    %27 = arith.mulf %25, %26 : vector<8x32xf32>
    %28 = vector.broadcast %7 : vector<1x32xf32> to vector<8x32xf32>
    %29 = arith.addf %27, %28 : vector<8x32xf32>
    %30 = arith.truncf %29 : vector<8x32xf32> to vector<8x32xbf16>
    %c0_13 = arith.constant 0 : index
    %c0_14 = arith.constant 0 : index
    %31 = vector.load %arg5[%c0_13, %c0_14] : memref<32x32xbf16, #tpu.memory_space<vmem>>, vector<32x32xbf16>
    %cst_15 = arith.constant dense<0.000000e+00> : vector<8x32xf32>
    %32 = tpu.matmul %30, %31, %cst_15 {dimension_numbers = #tpu.dot_dimension_numbers<[1], [0], [0], [1], [0, 0, 1, 1], [], []>} : vector<8x32xbf16>, vector<32x32xbf16>, vector<8x32xf32> -> vector<8x32xf32>
    %c0_16 = arith.constant 0 : index
    %c0_17 = arith.constant 0 : index
    %33 = vector.load %arg6[%c0_16, %c0_17] : memref<1x32xf32, #tpu.memory_space<vmem>>, vector<1x32xf32>
    %34 = vector.broadcast %33 : vector<1x32xf32> to vector<8x32xf32>
    %35 = arith.addf %32, %34 : vector<8x32xf32>
    %cst_18 = arith.constant dense<0xFF800000> : vector<8xf32>
    %36 = vector.multi_reduction <maximumf>, %35, %cst_18 [1] : vector<8x32xf32> to vector<8xf32>
    %37 = vector.shape_cast %36 : vector<8xf32> to vector<8x1xf32>
    %38 = vector.broadcast %37 : vector<8x1xf32> to vector<8x32xf32>
    %39 = arith.subf %35, %38 : vector<8x32xf32>
    %40 = math.exp %39 : vector<8x32xf32>
    %cst_19 = arith.constant dense<0.000000e+00> : vector<8x32xf32>
    %41 = tpu.matmul %40, %0, %cst_19 {dimension_numbers = #tpu.dot_dimension_numbers<[1], [0], [0], [1], [0, 0, 1, 1], [], []>} : vector<8x32xf32>, vector<32x32xf32>, vector<8x32xf32> -> vector<8x32xf32>
    %42 = tpu.reciprocal %41 {approx = true} : vector<8x32xf32> -> vector<8x32xf32>
    %43 = arith.mulf %40, %42 : vector<8x32xf32>
    %44 = arith.truncf %43 : vector<8x32xf32> to vector<8x32xbf16>
    %c0_20 = arith.constant 0 : index
    %c0_21 = arith.constant 0 : index
    %45 = vector.load %arg18[%c0_20, %c0_21] : memref<32x32xbf16, #tpu.memory_space<vmem>>, vector<32x32xbf16>
    %cst_22 = arith.constant dense<0.000000e+00> : vector<8x32xf32>
    %46 = tpu.matmul %44, %45, %cst_22 {dimension_numbers = #tpu.dot_dimension_numbers<[1], [0], [0], [1], [0, 0, 1, 1], [], []>} : vector<8x32xbf16>, vector<32x32xbf16>, vector<8x32xf32> -> vector<8x32xf32>
    %47 = arith.truncf %5 : vector<8x32xf32> to vector<8x32xbf16>
    %c0_23 = arith.constant 0 : index
    %c0_24 = arith.constant 0 : index
    %48 = vector.load %arg11[%c0_23, %c0_24] : memref<32x32xbf16, #tpu.memory_space<vmem>>, vector<32x32xbf16>
    %cst_25 = arith.constant dense<0.000000e+00> : vector<8x32xf32>
    %49 = tpu.matmul %47, %48, %cst_25 {dimension_numbers = #tpu.dot_dimension_numbers<[1], [0], [0], [1], [0, 0, 1, 1], [], []>} : vector<8x32xbf16>, vector<32x32xbf16>, vector<8x32xf32> -> vector<8x32xf32>
    %c0_26 = arith.constant 0 : index
    %c0_27 = arith.constant 0 : index
    %50 = vector.load %arg12[%c0_26, %c0_27] : memref<1x32xf32, #tpu.memory_space<vmem>>, vector<1x32xf32>
    %51 = vector.broadcast %50 : vector<1x32xf32> to vector<8x32xf32>
    %52 = arith.addf %49, %51 : vector<8x32xf32>
    %53 = arith.addf %52, %46 : vector<8x32xf32>
    %c0_28 = arith.constant 0 : index
    %c0_29 = arith.constant 0 : index
    %c0_30 = arith.constant 0 : index
    %54 = vector.load %arg17[%c0_28, %c0_29, %c0_30] : memref<1x8x32xf32, #tpu.memory_space<vmem>>, vector<1x8x32xf32>
    %55 = vector.shape_cast %54 : vector<1x8x32xf32> to vector<8x32xf32>
    %56 = vector.shape_cast %53 : vector<8x32xf32> to vector<1x8x32xf32>
    tpu.vector_store %arg17[%c0_28, %c0_29, %c0_30], %56 {strides = array<i32>} : memref<1x8x32xf32, #tpu.memory_space<vmem>>, vector<1x8x32xf32>,
    return
  }
  func.func @transform_0(%arg0: i32, %arg1: i32) -> (i32, i32, i32) {
    %c0_i32 = arith.constant 0 : i32
    %c0_i32_0 = arith.constant 0 : i32
    return %arg0, %arg1, %c0_i32 : i32, i32, i32
  }
  func.func @transform_1(%arg0: i32, %arg1: i32) -> (i32, i32, i32) {
    %c0_i32 = arith.constant 0 : i32
    %c0_i32_0 = arith.constant 0 : i32
    %c0_i32_1 = arith.constant 0 : i32
    return %arg0, %c0_i32, %c0_i32_0 : i32, i32, i32
  }
  func.func @transform_2(%arg0: i32, %arg1: i32) -> (i32, i32) {
    %c0_i32 = arith.constant 0 : i32
    %c0_i32_0 = arith.constant 0 : i32
    %c0_i32_1 = arith.constant 0 : i32
    return %c0_i32, %c0_i32_0 : i32, i32
  }
  func.func @transform_3(%arg0: i32, %arg1: i32) -> (i32, i32) {
    %c0_i32 = arith.constant 0 : i32
    %c0_i32_0 = arith.constant 0 : i32
    %c0_i32_1 = arith.constant 0 : i32
    return %c0_i32, %c0_i32_0 : i32, i32
  }
  func.func @transform_4(%arg0: i32, %arg1: i32) -> (i32, i32) {
    %c0_i32 = arith.constant 0 : i32
    %c0_i32_0 = arith.constant 0 : i32
    %c0_i32_1 = arith.constant 0 : i32
    return %c0_i32, %c0_i32_0 : i32, i32
  }
  func.func @transform_5(%arg0: i32, %arg1: i32) -> (i32, i32) {
    %c0_i32 = arith.constant 0 : i32
    %c0_i32_0 = arith.constant 0 : i32
    %c0_i32_1 = arith.constant 0 : i32
    return %c0_i32, %c0_i32_0 : i32, i32
  }
  func.func @transform_6(%arg0: i32, %arg1: i32) -> (i32, i32) {
    %c0_i32 = arith.constant 0 : i32
    %c0_i32_0 = arith.constant 0 : i32
    %c0_i32_1 = arith.constant 0 : i32
    return %c0_i32, %c0_i32_0 : i32, i32
  }
  func.func @transform_7(%arg0: i32, %arg1: i32) -> (i32, i32) {
    %c0_i32 = arith.constant 0 : i32
    %c0_i32_0 = arith.constant 0 : i32
    %c0_i32_1 = arith.constant 0 : i32
    return %c0_i32, %c0_i32_0 : i32, i32
  }
  func.func @transform_8(%arg0: i32, %arg1: i32) -> (i32, i32) {
    %c0_i32 = arith.constant 0 : i32
    %c0_i32_0 = arith.constant 0 : i32
    %c0_i32_1 = arith.constant 0 : i32
    return %c0_i32, %c0_i32_0 : i32, i32
  }
  func.func @transform_9(%arg0: i32, %arg1: i32) -> (i32, i32) {
    %c0_i32 = arith.constant 0 : i32
    %c0_i32_0 = arith.constant 0 : i32
    %c0_i32_1 = arith.constant 0 : i32
    return %c0_i32, %c0_i32_0 : i32, i32
  }
  func.func @transform_10(%arg0: i32, %arg1: i32) -> (i32, i32) {
    %c0_i32 = arith.constant 0 : i32
    %c0_i32_0 = arith.constant 0 : i32
    %c0_i32_1 = arith.constant 0 : i32
    return %c0_i32, %c0_i32_0 : i32, i32
  }
  func.func @transform_11(%arg0: i32, %arg1: i32) -> (i32, i32) {
    %c0_i32 = arith.constant 0 : i32
    %c0_i32_0 = arith.constant 0 : i32
    %c0_i32_1 = arith.constant 0 : i32
    return %c0_i32, %c0_i32_0 : i32, i32
  }
  func.func @transform_12(%arg0: i32, %arg1: i32) -> (i32, i32) {
    %c0_i32 = arith.constant 0 : i32
    %c0_i32_0 = arith.constant 0 : i32
    %c0_i32_1 = arith.constant 0 : i32
    return %c0_i32, %c0_i32_0 : i32, i32
  }
  func.func @transform_13(%arg0: i32, %arg1: i32) -> (i32, i32) {
    %c0_i32 = arith.constant 0 : i32
    %c0_i32_0 = arith.constant 0 : i32
    %c0_i32_1 = arith.constant 0 : i32
    return %c0_i32, %c0_i32_0 : i32, i32
  }
  func.func @transform_14(%arg0: i32, %arg1: i32) -> (i32, i32) {
    %c0_i32 = arith.constant 0 : i32
    %c0_i32_0 = arith.constant 0 : i32
    %c0_i32_1 = arith.constant 0 : i32
    return %c0_i32, %c0_i32_0 : i32, i32
  }
  func.func @transform_15(%arg0: i32, %arg1: i32) -> (i32, i32, i32) {
    %c0_i32 = arith.constant 0 : i32
    %c0_i32_0 = arith.constant 0 : i32
    return %arg0, %arg1, %c0_i32 : i32, i32, i32
  }
}

</mosaic_0001>

<llo_original>
// kernel: tpu_custom_call.1
$region0: #{tpu_custom_call.1}
  #allocation0 [shape = 'u32[]', space=smem, size = 0x4, offset = 0x4, fixed_abs, tag = 'smem constant byte address 0x4 - core index']
  #allocation1 [shape = 'u32[144,128]{1,0:T(1,128)}', space=vmem, size = 0x12000, scoped, tag = 'internal scratch']
  #allocation2 [shape = 'bf16[32,32]{1,0:T(16,128)(2,1)}', space=vmem, size = 0x2000, scoped, tag = 'scratch operand']
  %s0 = inlined_call_operand.hbm [shape: f32[2,8,32], index: 0, kind: input, shape index: {}]
  %s1 = inlined_call_operand.hbm [shape: f32[2,8,24], index: 1, kind: input, shape index: {}]
  %s2 = inlined_call_operand.hbm [shape: f32[32,32], index: 2, kind: input, shape index: {}]
  %s3 = inlined_call_operand.hbm [shape: bf16[32,32], index: 3, kind: input, shape index: {}]
  %s4 = inlined_call_operand.hbm [shape: f32[1,32], index: 4, kind: input, shape index: {}]
  %s5 = inlined_call_operand.hbm [shape: bf16[24,32], index: 5, kind: input, shape index: {}]
  %s6 = inlined_call_operand.hbm [shape: f32[1,32], index: 6, kind: input, shape index: {}]
  %s7 = inlined_call_operand.hbm [shape: bf16[24,32], index: 7, kind: input, shape index: {}]
  %s8 = inlined_call_operand.hbm [shape: f32[1,32], index: 8, kind: input, shape index: {}]
  %s9 = inlined_call_operand.hbm [shape: bf16[32,32], index: 9, kind: input, shape index: {}]
  %s10 = inlined_call_operand.hbm [shape: f32[1,32], index: 10, kind: input, shape index: {}]
  %s11 = inlined_call_operand.hbm [shape: f32[1,32], index: 11, kind: input, shape index: {}]
  %s12 = inlined_call_operand.hbm [shape: f32[1,32], index: 12, kind: input, shape index: {}]
  %s13 = inlined_call_operand.hbm [shape: f32[1,24], index: 13, kind: input, shape index: {}]
  %s14 = inlined_call_operand.hbm [shape: f32[1,24], index: 14, kind: input, shape index: {}]
  %s15 = inlined_call_operand.hbm [shape: f32[2,8,32], index: 15, kind: output, shape index: {}]
  %s16 = sld [smem:[#allocation0]]
  $region157: #{tpu_custom_call.1} parent=0
    _
  %s18 = ssub.s32 1, %s16
  %s19 = scalar_select 0, %s18, %s16
  $region1: #{tpu_custom_call.1} parent=0
    #allocation3 [shape = 'u8[8192]{0}', space=vmem, size = 0x2000, scoped, tag = 'input window, operand 0']
    #allocation4 [shape = 's32[2]{0}', space=sflag, size = 0x8, scoped, tag = 'scoped memory for tpu_custom_call.1']
    #allocation5 [shape = 's32[2]{0}', space=sflag, size = 0x8, scoped, tag = 'scoped memory for tpu_custom_call.1']
    #allocation6 [shape = 'u8[8192]{0}', space=vmem, size = 0x2000, scoped, tag = 'input window, operand 1']
    #allocation7 [shape = 's32[2]{0}', space=sflag, size = 0x8, scoped, tag = 'scoped memory for tpu_custom_call.1']
    #allocation8 [shape = 'u8[16384]{0}', space=vmem, size = 0x4000, scoped, tag = 'input window, operand 2, single buffered']
    #allocation9 [shape = 'u8[8192]{0}', space=vmem, size = 0x2000, scoped, tag = 'input window, operand 3, single buffered']
    #allocation10 [shape = 's32[1]{0}', space=sflag, size = 0x4, scoped, tag = 'scoped memory for tpu_custom_call.1']
    #allocation11 [shape = 'u8[512]{0}', space=vmem, size = 0x400, scoped, tag = 'input window, operand 4, single buffered']
    #allocation12 [shape = 'u8[6144]{0}', space=vmem, size = 0x1800, scoped, tag = 'input window, operand 5, single buffered']
    #allocation13 [shape = 's32[1]{0}', space=sflag, size = 0x4, scoped, tag = 'scoped memory for tpu_custom_call.1']
    #allocation14 [shape = 'u8[512]{0}', space=vmem, size = 0x400, scoped, tag = 'input window, operand 6, single buffered']
    #allocation15 [shape = 'u8[6144]{0}', space=vmem, size = 0x1800, scoped, tag = 'input window, operand 7, single buffered']
    #allocation16 [shape = 's32[1]{0}', space=sflag, size = 0x4, scoped, tag = 'scoped memory for tpu_custom_call.1']
    #allocation17 [shape = 'u8[512]{0}', space=vmem, size = 0x400, scoped, tag = 'input window, operand 8, single buffered']
    #allocation18 [shape = 'u8[8192]{0}', space=vmem, size = 0x2000, scoped, tag = 'input window, operand 9, single buffered']
    #allocation19 [shape = 's32[1]{0}', space=sflag, size = 0x4, scoped, tag = 'scoped memory for tpu_custom_call.1']
    #allocation20 [shape = 'u8[512]{0}', space=vmem, size = 0x400, scoped, tag = 'input window, operand 10, single buffered']
    #allocation21 [shape = 'u8[512]{0}', space=vmem, size = 0x400, scoped, tag = 'input window, operand 11, single buffered']
    #allocation22 [shape = 's32[1]{0}', space=sflag, size = 0x4, scoped, tag = 'scoped memory for tpu_custom_call.1']
    #allocation23 [shape = 'u8[512]{0}', space=vmem, size = 0x400, scoped, tag = 'input window, operand 12, single buffered']
    #allocation24 [shape = 'u8[512]{0}', space=vmem, size = 0x400, scoped, tag = 'input window, operand 13, single buffered']
    #allocation25 [shape = 's32[1]{0}', space=sflag, size = 0x4, scoped, tag = 'scoped memory for tpu_custom_call.1']
    #allocation26 [shape = 'u8[512]{0}', space=vmem, size = 0x400, scoped, tag = 'input window, operand 14, single buffered']
    #allocation27 [shape = 'u8[8192]{0}', space=vmem, size = 0x2000, scoped, tag = 'output window, operand 0']
    %20 = vsyncpa [#allocation4], 0
    %s21 = scalar_lea.sflag [#allocation4], 1
    %22 = vsyncpa %s21, 0
    %23 = vsyncpa [#allocation7], 0
    %s24 = scalar_lea.sflag [#allocation7], 1
    %25 = vsyncpa %s24, 0
    %26 = vsyncpa [#allocation10], 0
    %27 = vsyncpa [#allocation13], 0
    %28 = vsyncpa [#allocation16], 0
    %29 = vsyncpa [#allocation19], 0
    %30 = vsyncpa [#allocation22], 0
    %31 = vsyncpa [#allocation25], 0
    %32 = vsyncpa [#allocation5], 0
    %s33 = scalar_lea.sflag [#allocation5], 1
    %34 = vsyncpa %s33, 0
    loop: start=0, step=1, limit=4
    $region2: #{tpu_custom_call.1} parent=1 // loop_pre_header
      _
    $region3: #{tpu_custom_call.1} parent=1 // loop_header
      %s36 = sphi 0, %s40
      %p37 = scmp.ge.s32.totalorder %s36, 4
      %s43 = sphi 0, %s55
      %s44 = sphi 0, %s51
      %s45 = sphi 0, %s43
      %s46 = sphi 0, %s44
      %s47 = sphi 0, %s45
      %s48 = sphi 0, %s46
      %s60 = sphi 0, %s62
      %s63 = sphi 0, %s60
      %s64 = sphi 0, %s63
      %s80 = sphi 0, %s64
      %s86 = sphi 0, %s88
      %s89 = sphi 0, %s86
      %s90 = sphi 0, %s89
      %s106 = sphi 0, %s90
      %s110 = sphi 0, %s110
      %s112 = sphi 0, %s110
      %s113 = sphi 0, %s112
      %s127 = sphi 0, %s113
      %s131 = sphi 0, %s131
      %s133 = sphi 0, %s131
      %s134 = sphi 0, %s133
      %s148 = sphi 0, %s134
      %s152 = sphi 0, %s152
      %s154 = sphi 0, %s152
      %s155 = sphi 0, %s154
      %s169 = sphi 0, %s155
      %s173 = sphi 0, %s173
      %s175 = sphi 0, %s173
      %s176 = sphi 0, %s175
      %s190 = sphi 0, %s176
      %s194 = sphi 0, %s194
      %s196 = sphi 0, %s194
      %s197 = sphi 0, %s196
      %s211 = sphi 0, %s197
      %s215 = sphi 0, %s215
      %s217 = sphi 0, %s215
      %s218 = sphi 0, %s217
      %s232 = sphi 0, %s218
      %s236 = sphi 0, %s236
      %s238 = sphi 0, %s236
      %s239 = sphi 0, %s238
      %s253 = sphi 0, %s239
      %s257 = sphi 0, %s257
      %s259 = sphi 0, %s257
      %s260 = sphi 0, %s259
      %s274 = sphi 0, %s260
      %s278 = sphi 0, %s278
      %s280 = sphi 0, %s278
      %s281 = sphi 0, %s280
      %s295 = sphi 0, %s281
      %s299 = sphi 0, %s299
      %s301 = sphi 0, %s299
      %s302 = sphi 0, %s301
      %s316 = sphi 0, %s302
      %s320 = sphi 0, %s320
      %s322 = sphi 0, %s320
      %s323 = sphi 0, %s322
      %s337 = sphi 0, %s323
      %s341 = sphi 0, %s341
      %s343 = sphi 0, %s341
      %s344 = sphi 0, %s343
      %s358 = sphi 0, %s344
      %s362 = sphi 0, %s362
      %s364 = sphi 0, %s362
      %s365 = sphi 0, %s364
      %s379 = sphi 0, %s365
      %s387 = sphi 0, %s389
      %s390 = sphi 0, %s387
      %s391 = sphi 0, %s390
      %s407 = sphi 0, %s391
    $region4: #{tpu_custom_call.1} parent=1 // loop_header_branch
      %39 = sbr.rel (%p37) target = $region8
    $region5: #{tpu_custom_call.1} parent=1 // loop_body
      %s41 = ssub.s32 %s36, 1
      %s42 = ssub.s32 %s36, 2
      %s49 = sadd.s32 1, %s44
      %p50 = scmp.ge.s32.totalorder %s49, 1
      %s51 = scalar_select %p50, 0, %s49
      %s52 = sadd.s32 1, %s43
      %s53 = scalar_select %p50, %s52, %s43
      %p54 = scmp.ge.s32.totalorder %s53, 2
      %s55 = scalar_select %p54, 0, %s53
      %s56 = ssub.s32 %s43, %s55
      %s57 = ssub.s32 %s44, %s51
      %s58 = sor.u32 %s56, %s57
      %p59 = scmp.eq.s32.totalorder %s58, 0
      %s61 = sadd.s32 %s60, 1
      %s62 = scalar_select %p59, %s60, %s61
      %p65 = pneg %p59
      %p66 = scmp.eq.s32.totalorder %s36, 1
      %p67 = por %p65, %p66
      %p68 = scmp.ne.s32.totalorder %s60, %s63
      %p69 = scmp.eq.s32.totalorder %s36, 0
      %p70 = por %p68, %p69
      %p71 = scmp.ne.s32.totalorder %s60, %s63
      %p72 = scmp.eq.s32.totalorder %s41, 1
      %p73 = por %p71, %p72
      %p74 = scmp.ne.s32.totalorder %s63, %s64
      %p75 = scmp.eq.s32.totalorder %s41, 0
      %p76 = por %p74, %p75
      %p77 = scmp.ne.s32.totalorder %s63, %s64
      %p78 = scmp.eq.s32.totalorder %s42, 1
      %p79 = por %p77, %p78
      %p81 = scmp.ne.s32.totalorder %s64, %s80
      %p82 = scmp.eq.s32.totalorder %s42, 0
      %p83 = por %p81, %p82
      %s84 = ssub.s32 %s43, %s55
      %p85 = scmp.eq.s32.totalorder %s84, 0
      %s87 = sadd.s32 %s86, 1
      %s88 = scalar_select %p85, %s86, %s87
      %p91 = pneg %p85
      %p92 = scmp.eq.s32.totalorder %s36, 1
      %p93 = por %p91, %p92
      %p94 = scmp.ne.s32.totalorder %s86, %s89
      %p95 = scmp.eq.s32.totalorder %s36, 0
      %p96 = por %p94, %p95
      %p97 = scmp.ne.s32.totalorder %s86, %s89
      %p98 = scmp.eq.s32.totalorder %s41, 1
      %p99 = por %p97, %p98
      %p100 = scmp.ne.s32.totalorder %s89, %s90
      %p101 = scmp.eq.s32.totalorder %s41, 0
      %p102 = por %p100, %p101
      %p103 = scmp.ne.s32.totalorder %s89, %s90
      %p104 = scmp.eq.s32.totalorder %s42, 1
      %p105 = por %p103, %p104
      %p107 = scmp.ne.s32.totalorder %s90, %s106
      %p108 = scmp.eq.s32.totalorder %s42, 0
      %p109 = por %p107, %p108
      %s111 = sadd.s32 %s110, 1
      %p114 = scmp.eq.s32.totalorder %s36, 1
      %p115 = scmp.ne.s32.totalorder %s110, %s112
      %p116 = scmp.eq.s32.totalorder %s36, 0
      %p117 = por %p115, %p116
      %p118 = scmp.ne.s32.totalorder %s110, %s112
      %p119 = scmp.eq.s32.totalorder %s41, 1
      %p120 = por %p118, %p119
      %p121 = scmp.ne.s32.totalorder %s112, %s113
      %p122 = scmp.eq.s32.totalorder %s41, 0
      %p123 = por %p121, %p122
      %p124 = scmp.ne.s32.totalorder %s112, %s113
      %p125 = scmp.eq.s32.totalorder %s42, 1
      %p126 = por %p124, %p125
      %p128 = scmp.ne.s32.totalorder %s113, %s127
      %p129 = scmp.eq.s32.totalorder %s42, 0
      %p130 = por %p128, %p129
      %s132 = sadd.s32 %s131, 1
      %p135 = scmp.eq.s32.totalorder %s36, 1
      %p136 = scmp.ne.s32.totalorder %s131, %s133
      %p137 = scmp.eq.s32.totalorder %s36, 0
      %p138 = por %p136, %p137
      %p139 = scmp.ne.s32.totalorder %s131, %s133
      %p140 = scmp.eq.s32.totalorder %s41, 1
      %p141 = por %p139, %p140
      %p142 = scmp.ne.s32.totalorder %s133, %s134
      %p143 = scmp.eq.s32.totalorder %s41, 0
      %p144 = por %p142, %p143
      %p145 = scmp.ne.s32.totalorder %s133, %s134
      %p146 = scmp.eq.s32.totalorder %s42, 1
      %p147 = por %p145, %p146
      %p149 = scmp.ne.s32.totalorder %s134, %s148
      %p150 = scmp.eq.s32.totalorder %s42, 0
      %p151 = por %p149, %p150
      %s153 = sadd.s32 %s152, 1
      %p156 = scmp.eq.s32.totalorder %s36, 1
      %p157 = scmp.ne.s32.totalorder %s152, %s154
      %p158 = scmp.eq.s32.totalorder %s36, 0
      %p159 = por %p157, %p158
      %p160 = scmp.ne.s32.totalorder %s152, %s154
      %p161 = scmp.eq.s32.totalorder %s41, 1
      %p162 = por %p160, %p161
      %p163 = scmp.ne.s32.totalorder %s154, %s155
      %p164 = scmp.eq.s32.totalorder %s41, 0
      %p165 = por %p163, %p164
      %p166 = scmp.ne.s32.totalorder %s154, %s155
      %p167 = scmp.eq.s32.totalorder %s42, 1
      %p168 = por %p166, %p167
      %p170 = scmp.ne.s32.totalorder %s155, %s169
      %p171 = scmp.eq.s32.totalorder %s42, 0
      %p172 = por %p170, %p171
      %s174 = sadd.s32 %s173, 1
      %p177 = scmp.eq.s32.totalorder %s36, 1
      %p178 = scmp.ne.s32.totalorder %s173, %s175
      %p179 = scmp.eq.s32.totalorder %s36, 0
      %p180 = por %p178, %p179
      %p181 = scmp.ne.s32.totalorder %s173, %s175
      %p182 = scmp.eq.s32.totalorder %s41, 1
      %p183 = por %p181, %p182
      %p184 = scmp.ne.s32.totalorder %s175, %s176
      %p185 = scmp.eq.s32.totalorder %s41, 0
      %p186 = por %p184, %p185
      %p187 = scmp.ne.s32.totalorder %s175, %s176
      %p188 = scmp.eq.s32.totalorder %s42, 1
      %p189 = por %p187, %p188
      %p191 = scmp.ne.s32.totalorder %s176, %s190
      %p192 = scmp.eq.s32.totalorder %s42, 0
      %p193 = por %p191, %p192
      %s195 = sadd.s32 %s194, 1
      %p198 = scmp.eq.s32.totalorder %s36, 1
      %p199 = scmp.ne.s32.totalorder %s194, %s196
      %p200 = scmp.eq.s32.totalorder %s36, 0
      %p201 = por %p199, %p200
      %p202 = scmp.ne.s32.totalorder %s194, %s196
      %p203 = scmp.eq.s32.totalorder %s41, 1
      %p204 = por %p202, %p203
      %p205 = scmp.ne.s32.totalorder %s196, %s197
      %p206 = scmp.eq.s32.totalorder %s41, 0
      %p207 = por %p205, %p206
      %p208 = scmp.ne.s32.totalorder %s196, %s197
      %p209 = scmp.eq.s32.totalorder %s42, 1
      %p210 = por %p208, %p209
      %p212 = scmp.ne.s32.totalorder %s197, %s211
      %p213 = scmp.eq.s32.totalorder %s42, 0
      %p214 = por %p212, %p213
      %s216 = sadd.s32 %s215, 1
      %p219 = scmp.eq.s32.totalorder %s36, 1
      %p220 = scmp.ne.s32.totalorder %s215, %s217
      %p221 = scmp.eq.s32.totalorder %s36, 0
      %p222 = por %p220, %p221
      %p223 = scmp.ne.s32.totalorder %s215, %s217
      %p224 = scmp.eq.s32.totalorder %s41, 1
      %p225 = por %p223, %p224
      %p226 = scmp.ne.s32.totalorder %s217, %s218
      %p227 = scmp.eq.s32.totalorder %s41, 0
      %p228 = por %p226, %p227
      %p229 = scmp.ne.s32.totalorder %s217, %s218
      %p230 = scmp.eq.s32.totalorder %s42, 1
      %p231 = por %p229, %p230
      %p233 = scmp.ne.s32.totalorder %s218, %s232
      %p234 = scmp.eq.s32.totalorder %s42, 0
      %p235 = por %p233, %p234
      %s237 = sadd.s32 %s236, 1
      %p240 = scmp.eq.s32.totalorder %s36, 1
      %p241 = scmp.ne.s32.totalorder %s236, %s238
      %p242 = scmp.eq.s32.totalorder %s36, 0
      %p243 = por %p241, %p242
      %p244 = scmp.ne.s32.totalorder %s236, %s238
      %p245 = scmp.eq.s32.totalorder %s41, 1
      %p246 = por %p244, %p245
      %p247 = scmp.ne.s32.totalorder %s238, %s239
      %p248 = scmp.eq.s32.totalorder %s41, 0
      %p249 = por %p247, %p248
      %p250 = scmp.ne.s32.totalorder %s238, %s239
      %p251 = scmp.eq.s32.totalorder %s42, 1
      %p252 = por %p250, %p251
      %p254 = scmp.ne.s32.totalorder %s239, %s253
      %p255 = scmp.eq.s32.totalorder %s42, 0
      %p256 = por %p254, %p255
      %s258 = sadd.s32 %s257, 1
      %p261 = scmp.eq.s32.totalorder %s36, 1
      %p262 = scmp.ne.s32.totalorder %s257, %s259
      %p263 = scmp.eq.s32.totalorder %s36, 0
      %p264 = por %p262, %p263
      %p265 = scmp.ne.s32.totalorder %s257, %s259
      %p266 = scmp.eq.s32.totalorder %s41, 1
      %p267 = por %p265, %p266
      %p268 = scmp.ne.s32.totalorder %s259, %s260
      %p269 = scmp.eq.s32.totalorder %s41, 0
      %p270 = por %p268, %p269
      %p271 = scmp.ne.s32.totalorder %s259, %s260
      %p272 = scmp.eq.s32.totalorder %s42, 1
      %p273 = por %p271, %p272
      %p275 = scmp.ne.s32.totalorder %s260, %s274
      %p276 = scmp.eq.s32.totalorder %s42, 0
      %p277 = por %p275, %p276
      %s279 = sadd.s32 %s278, 1
      %p282 = scmp.eq.s32.totalorder %s36, 1
      %p283 = scmp.ne.s32.totalorder %s278, %s280
      %p284 = scmp.eq.s32.totalorder %s36, 0
      %p285 = por %p283, %p284
      %p286 = scmp.ne.s32.totalorder %s278, %s280
      %p287 = scmp.eq.s32.totalorder %s41, 1
      %p288 = por %p286, %p287
      %p289 = scmp.ne.s32.totalorder %s280, %s281
      %p290 = scmp.eq.s32.totalorder %s41, 0
      %p291 = por %p289, %p290
      %p292 = scmp.ne.s32.totalorder %s280, %s281
      %p293 = scmp.eq.s32.totalorder %s42, 1
      %p294 = por %p292, %p293
      %p296 = scmp.ne.s32.totalorder %s281, %s295
      %p297 = scmp.eq.s32.totalorder %s42, 0
      %p298 = por %p296, %p297
      %s300 = sadd.s32 %s299, 1
      %p303 = scmp.eq.s32.totalorder %s36, 1
      %p304 = scmp.ne.s32.totalorder %s299, %s301
      %p305 = scmp.eq.s32.totalorder %s36, 0
      %p306 = por %p304, %p305
      %p307 = scmp.ne.s32.totalorder %s299, %s301
      %p308 = scmp.eq.s32.totalorder %s41, 1
      %p309 = por %p307, %p308
      %p310 = scmp.ne.s32.totalorder %s301, %s302
      %p311 = scmp.eq.s32.totalorder %s41, 0
      %p312 = por %p310, %p311
      %p313 = scmp.ne.s32.totalorder %s301, %s302
      %p314 = scmp.eq.s32.totalorder %s42, 1
      %p315 = por %p313, %p314
      %p317 = scmp.ne.s32.totalorder %s302, %s316
      %p318 = scmp.eq.s32.totalorder %s42, 0
      %p319 = por %p317, %p318
      %s321 = sadd.s32 %s320, 1
      %p324 = scmp.eq.s32.totalorder %s36, 1
      %p325 = scmp.ne.s32.totalorder %s320, %s322
      %p326 = scmp.eq.s32.totalorder %s36, 0
      %p327 = por %p325, %p326
      %p328 = scmp.ne.s32.totalorder %s320, %s322
      %p329 = scmp.eq.s32.totalorder %s41, 1
      %p330 = por %p328, %p329
      %p331 = scmp.ne.s32.totalorder %s322, %s323
      %p332 = scmp.eq.s32.totalorder %s41, 0
      %p333 = por %p331, %p332
      %p334 = scmp.ne.s32.totalorder %s322, %s323
      %p335 = scmp.eq.s32.totalorder %s42, 1
      %p336 = por %p334, %p335
      %p338 = scmp.ne.s32.totalorder %s323, %s337
      %p339 = scmp.eq.s32.totalorder %s42, 0
      %p340 = por %p338, %p339
      %s342 = sadd.s32 %s341, 1
      %p345 = scmp.eq.s32.totalorder %s36, 1
      %p346 = scmp.ne.s32.totalorder %s341, %s343
      %p347 = scmp.eq.s32.totalorder %s36, 0
      %p348 = por %p346, %p347
      %p349 = scmp.ne.s32.totalorder %s341, %s343
      %p350 = scmp.eq.s32.totalorder %s41, 1
      %p351 = por %p349, %p350
      %p352 = scmp.ne.s32.totalorder %s343, %s344
      %p353 = scmp.eq.s32.totalorder %s41, 0
      %p354 = por %p352, %p353
      %p355 = scmp.ne.s32.totalorder %s343, %s344
      %p356 = scmp.eq.s32.totalorder %s42, 1
      %p357 = por %p355, %p356
      %p359 = scmp.ne.s32.totalorder %s344, %s358
      %p360 = scmp.eq.s32.totalorder %s42, 0
      %p361 = por %p359, %p360
      %s363 = sadd.s32 %s362, 1
      %p366 = scmp.eq.s32.totalorder %s36, 1
      %p367 = scmp.ne.s32.totalorder %s362, %s364
      %p368 = scmp.eq.s32.totalorder %s36, 0
      %p369 = por %p367, %p368
      %p370 = scmp.ne.s32.totalorder %s362, %s364
      %p371 = scmp.eq.s32.totalorder %s41, 1
      %p372 = por %p370, %p371
      %p373 = scmp.ne.s32.totalorder %s364, %s365
      %p374 = scmp.eq.s32.totalorder %s41, 0
      %p375 = por %p373, %p374
      %p376 = scmp.ne.s32.totalorder %s364, %s365
      %p377 = scmp.eq.s32.totalorder %s42, 1
      %p378 = por %p376, %p377
      %p380 = scmp.ne.s32.totalorder %s365, %s379
      %p381 = scmp.eq.s32.totalorder %s42, 0
      %p382 = por %p380, %p381
      %s383 = ssub.s32 %s43, %s55
      %s384 = ssub.s32 %s44, %s51
      %s385 = sor.u32 %s383, %s384
      %p386 = scmp.eq.s32.totalorder %s385, 0
      %s388 = sadd.s32 %s387, 1
      %s389 = scalar_select %p386, %s387, %s388
      %p392 = pneg %p386
      %p393 = scmp.eq.s32.totalorder %s36, 1
      %p394 = por %p392, %p393
      %p395 = scmp.ne.s32.totalorder %s387, %s390
      %p396 = scmp.eq.s32.totalorder %s36, 0
      %p397 = por %p395, %p396
      %p398 = scmp.ne.s32.totalorder %s387, %s390
      %p399 = scmp.eq.s32.totalorder %s41, 1
      %p400 = por %p398, %p399
      %p401 = scmp.ne.s32.totalorder %s390, %s391
      %p402 = scmp.eq.s32.totalorder %s41, 0
      %p403 = por %p401, %p402
      %p404 = scmp.ne.s32.totalorder %s390, %s391
      %p405 = scmp.eq.s32.totalorder %s42, 1
      %p406 = por %p404, %p405
      %p408 = scmp.ne.s32.totalorder %s391, %s407
      %p409 = scmp.eq.s32.totalorder %s42, 0
      %p410 = por %p408, %p409
      %p411 = scmp.le.s32.totalorder 1, %s36
      %p412 = scmp.lt.s32.totalorder %s36, 3
      %p413 = pnand %p411, %p412
      %p414 = pneg %p413
      // Predicated region
      $region9: #{tpu_custom_call.1} parent=5 // pred_check
        _
      $region10: #{tpu_custom_call.1} parent=5 // pred_check_branch
        %416 = sbr.rel (%p413) target = $region12
      $region11: #{tpu_custom_call.1} parent=5 // pred_region
        %s417 = ssub.s32 %s36, 1
        // Predicated region
        $region13: #{tpu_custom_call.1} parent=11 // pred_check
          %p418 = pneg %p123
        $region14: #{tpu_custom_call.1} parent=11 // pred_check_branch
          %420 = sbr.rel (%p418) target = $region16
        $region15: #{tpu_custom_call.1} parent=11 // pred_region
          %s422 = ssub.s32 512, 512
          %423 = vsyncadd [#allocation7], %s422
          %s424 = sshll.u32 [#allocation8], 4
          %s425 = int_to_ptr.vmem [resolvable:$true] %s424
          %430 = dma.hbm_to_vmem [thread:$0]  %s2, 512, %s425, [#allocation7], 128, 128, 8
        $region16: #{tpu_custom_call.1} parent=11 // pred_fallthru
          _
        // Predicated region
        $region17: #{tpu_custom_call.1} parent=11 // pred_check
          %p431 = pneg %p144
        $region18: #{tpu_custom_call.1} parent=11 // pred_check_branch
          %433 = sbr.rel (%p431) target = $region20
        $region19: #{tpu_custom_call.1} parent=11 // pred_region
          %s435 = ssub.s32 256, 256
          %436 = vsyncadd [#allocation10], %s435
          %s437 = sshll.u32 [#allocation9], 4
          %s438 = int_to_ptr.vmem [resolvable:$true] %s437
          %443 = dma.hbm_to_vmem [thread:$0]  %s3, 256, %s438, [#allocation10], 64, 64, 4
        $region20: #{tpu_custom_call.1} parent=11 // pred_fallthru
          _
        // Predicated region
        $region21: #{tpu_custom_call.1} parent=11 // pred_check
          %p444 = pneg %p165
        $region22: #{tpu_custom_call.1} parent=11 // pred_check_branch
          %446 = sbr.rel (%p444) target = $region24
        $region23: #{tpu_custom_call.1} parent=11 // pred_region
          %s448 = ssub.s32 16, 16
          %449 = vsyncadd [#allocation10], %s448
          %s451 = sshll.u32 [#allocation11], 4
          %s452 = int_to_ptr.vmem [resolvable:$true] %s451
          %454 = dma.hbm_to_vmem [thread:$0]  %s4, 16, %s452, [#allocation10]
        $region24: #{tpu_custom_call.1} parent=11 // pred_fallthru
          _
        // Predicated region
        $region25: #{tpu_custom_call.1} parent=11 // pred_check
          %p455 = pneg %p186
        $region26: #{tpu_custom_call.1} parent=11 // pred_check_branch
          %457 = sbr.rel (%p455) target = $region28
        $region27: #{tpu_custom_call.1} parent=11 // pred_region
          %s459 = ssub.s32 192, 192
          %460 = vsyncadd [#allocation13], %s459
          %s461 = sshll.u32 [#allocation12], 4
          %s462 = int_to_ptr.vmem [resolvable:$true] %s461
          %467 = dma.hbm_to_vmem [thread:$0]  %s5, 192, %s462, [#allocation13], 64, 64, 4
        $region28: #{tpu_custom_call.1} parent=11 // pred_fallthru
          _
        // Predicated region
        $region29: #{tpu_custom_call.1} parent=11 // pred_check
          %p468 = pneg %p207
        $region30: #{tpu_custom_call.1} parent=11 // pred_check_branch
          %470 = sbr.rel (%p468) target = $region32
        $region31: #{tpu_custom_call.1} parent=11 // pred_region
          %s472 = ssub.s32 16, 16
          %473 = vsyncadd [#allocation13], %s472
          %s475 = sshll.u32 [#allocation14], 4
          %s476 = int_to_ptr.vmem [resolvable:$true] %s475
          %478 = dma.hbm_to_vmem [thread:$0]  %s6, 16, %s476, [#allocation13]
        $region32: #{tpu_custom_call.1} parent=11 // pred_fallthru
          _
        // Predicated region
        $region33: #{tpu_custom_call.1} parent=11 // pred_check
          %p479 = pneg %p228
        $region34: #{tpu_custom_call.1} parent=11 // pred_check_branch
          %481 = sbr.rel (%p479) target = $region36
        $region35: #{tpu_custom_call.1} parent=11 // pred_region
          %s483 = ssub.s32 192, 192
          %484 = vsyncadd [#allocation16], %s483
          %s485 = sshll.u32 [#allocation15], 4
          %s486 = int_to_ptr.vmem [resolvable:$true] %s485
          %491 = dma.hbm_to_vmem [thread:$0]  %s7, 192, %s486, [#allocation16], 64, 64, 4
        $region36: #{tpu_custom_call.1} parent=11 // pred_fallthru
          _
        // Predicated region
        $region37: #{tpu_custom_call.1} parent=11 // pred_check
          %p492 = pneg %p249
        $region38: #{tpu_custom_call.1} parent=11 // pred_check_branch
          %494 = sbr.rel (%p492) target = $region40
        $region39: #{tpu_custom_call.1} parent=11 // pred_region
          %s496 = ssub.s32 16, 16
          %497 = vsyncadd [#allocation16], %s496
          %s499 = sshll.u32 [#allocation17], 4
          %s500 = int_to_ptr.vmem [resolvable:$true] %s499
          %502 = dma.hbm_to_vmem [thread:$0]  %s8, 16, %s500, [#allocation16]
        $region40: #{tpu_custom_call.1} parent=11 // pred_fallthru
          _
        // Predicated region
        $region41: #{tpu_custom_call.1} parent=11 // pred_check
          %p503 = pneg %p270
        $region42: #{tpu_custom_call.1} parent=11 // pred_check_branch
          %505 = sbr.rel (%p503) target = $region44
        $region43: #{tpu_custom_call.1} parent=11 // pred_region
          %s507 = ssub.s32 256, 256
          %508 = vsyncadd [#allocation19], %s507
          %s509 = sshll.u32 [#allocation18], 4
          %s510 = int_to_ptr.vmem [resolvable:$true] %s509
          %515 = dma.hbm_to_vmem [thread:$0]  %s9, 256, %s510, [#allocation19], 64, 64, 4
        $region44: #{tpu_custom_call.1} parent=11 // pred_fallthru
          _
        // Predicated region
        $region45: #{tpu_custom_call.1} parent=11 // pred_check
          %p516 = pneg %p291
        $region46: #{tpu_custom_call.1} parent=11 // pred_check_branch
          %518 = sbr.rel (%p516) target = $region48
        $region47: #{tpu_custom_call.1} parent=11 // pred_region
          %s520 = ssub.s32 16, 16
          %521 = vsyncadd [#allocation19], %s520
          %s523 = sshll.u32 [#allocation20], 4
          %s524 = int_to_ptr.vmem [resolvable:$true] %s523
          %526 = dma.hbm_to_vmem [thread:$0]  %s10, 16, %s524, [#allocation19]
        $region48: #{tpu_custom_call.1} parent=11 // pred_fallthru
          _
        // Predicated region
        $region49: #{tpu_custom_call.1} parent=11 // pred_check
          %p527 = pneg %p312
        $region50: #{tpu_custom_call.1} parent=11 // pred_check_branch
          %529 = sbr.rel (%p527) target = $region52
        $region51: #{tpu_custom_call.1} parent=11 // pred_region
          %s531 = ssub.s32 16, 16
          %532 = vsyncadd [#allocation22], %s531
          %s534 = sshll.u32 [#allocation21], 4
          %s535 = int_to_ptr.vmem [resolvable:$true] %s534
          %537 = dma.hbm_to_vmem [thread:$0]  %s11, 16, %s535, [#allocation22]
        $region52: #{tpu_custom_call.1} parent=11 // pred_fallthru
          _
        // Predicated region
        $region53: #{tpu_custom_call.1} parent=11 // pred_check
          %p538 = pneg %p333
        $region54: #{tpu_custom_call.1} parent=11 // pred_check_branch
          %540 = sbr.rel (%p538) target = $region56
        $region55: #{tpu_custom_call.1} parent=11 // pred_region
          %s542 = ssub.s32 16, 16
          %543 = vsyncadd [#allocation22], %s542
          %s545 = sshll.u32 [#allocation23], 4
          %s546 = int_to_ptr.vmem [resolvable:$true] %s545
          %548 = dma.hbm_to_vmem [thread:$0]  %s12, 16, %s546, [#allocation22]
        $region56: #{tpu_custom_call.1} parent=11 // pred_fallthru
          _
        // Predicated region
        $region57: #{tpu_custom_call.1} parent=11 // pred_check
          %p549 = pneg %p354
        $region58: #{tpu_custom_call.1} parent=11 // pred_check_branch
          %551 = sbr.rel (%p549) target = $region60
        $region59: #{tpu_custom_call.1} parent=11 // pred_region
          %s553 = ssub.s32 16, 16
          %554 = vsyncadd [#allocation25], %s553
          %s556 = sshll.u32 [#allocation24], 4
          %s557 = int_to_ptr.vmem [resolvable:$true] %s556
          %559 = dma.hbm_to_vmem [thread:$0]  %s13, 16, %s557, [#allocation25]
        $region60: #{tpu_custom_call.1} parent=11 // pred_fallthru
          _
        // Predicated region
        $region61: #{tpu_custom_call.1} parent=11 // pred_check
          %p560 = pneg %p375
        $region62: #{tpu_custom_call.1} parent=11 // pred_check_branch
          %562 = sbr.rel (%p560) target = $region64
        $region63: #{tpu_custom_call.1} parent=11 // pred_region
          %s564 = ssub.s32 16, 16
          %565 = vsyncadd [#allocation25], %s564
          %s567 = sshll.u32 [#allocation26], 4
          %s568 = int_to_ptr.vmem [resolvable:$true] %s567
          %570 = dma.hbm_to_vmem [thread:$0]  %s14, 16, %s568, [#allocation25]
        $region64: #{tpu_custom_call.1} parent=11 // pred_fallthru
          _
      $region12: #{tpu_custom_call.1} parent=5 // pred_fallthru
        _
      %p571 = scmp.lt.s32.totalorder %s36, 2
      // Predicated region
      $region65: #{tpu_custom_call.1} parent=5 // pred_check
        %p572 = pneg %p571
      $region66: #{tpu_custom_call.1} parent=5 // pred_check_branch
        %574 = sbr.rel (%p572) target = $region68
      $region67: #{tpu_custom_call.1} parent=5 // pred_region
        // Predicated region
        $region69: #{tpu_custom_call.1} parent=67 // pred_check
          %p575 = pneg %p70
        $region70: #{tpu_custom_call.1} parent=67 // pred_check_branch
          %577 = sbr.rel (%p575) target = $region72
        $region71: #{tpu_custom_call.1} parent=67 // pred_region
          %s578 = sand.u32 %s60, 1
          %s579 = scalar_lea.sflag [#allocation4], %s578
          %s580 = sand.u32 %s60, 1
          %s581 = smul.addr %s580, 8
          %s582 = scalar_lea.vmem [#allocation3], %s581
          %s584 = ssub.s32 128, 128
          %585 = vsyncadd %s579, %s584
          %s586 = sadd.s32 %s44, %s43
          %s587 = smul.addr %s586, 128
          %s588 = scalar_lea.hbm %s0, %s587
          %s590 = sshll.u32 %s582, 4
          %s591 = int_to_ptr.vmem [resolvable:$true] %s590
          %593 = dma.hbm_to_vmem [thread:$0]  %s588, 128, %s591, %s579
        $region72: #{tpu_custom_call.1} parent=67 // pred_fallthru
          _
        // Predicated region
        $region73: #{tpu_custom_call.1} parent=67 // pred_check
          %p594 = pneg %p96
        $region74: #{tpu_custom_call.1} parent=67 // pred_check_branch
          %596 = sbr.rel (%p594) target = $region76
        $region75: #{tpu_custom_call.1} parent=67 // pred_region
          %s597 = sand.u32 %s36, 1
          %s598 = scalar_lea.sflag [#allocation7], %s597
          %s599 = sand.u32 %s86, 1
          %s600 = smul.addr %s599, 8
          %s601 = scalar_lea.vmem [#allocation6], %s600
          %s603 = ssub.s32 128, 128
          %604 = vsyncadd %s598, %s603
          %s605 = smul.addr %s43, 128
          %s606 = scalar_lea.hbm %s1, %s605
          %s608 = sshll.u32 %s601, 4
          %s609 = int_to_ptr.vmem [resolvable:$true] %s608
          %611 = dma.hbm_to_vmem [thread:$0]  %s606, 128, %s609, %s598
        $region76: #{tpu_custom_call.1} parent=67 // pred_fallthru
          _
      $region68: #{tpu_custom_call.1} parent=5 // pred_fallthru
        _
      %p612 = scmp.le.s32.totalorder 1, %s36
      %p613 = scmp.lt.s32.totalorder %s36, 3
      %p614 = pnand %p612, %p613
      %p615 = pneg %p614
      // Predicated region
      $region77: #{tpu_custom_call.1} parent=5 // pred_check
        _
      $region78: #{tpu_custom_call.1} parent=5 // pred_check_branch
        %617 = sbr.rel (%p614) target = $region80
      $region79: #{tpu_custom_call.1} parent=5 // pred_region
        %s618 = ssub.s32 %s36, 1
        %s619 = sand.u32 %s63, 1
        %s620 = scalar_lea.sflag [#allocation4], %s619
        %s621 = sand.u32 %s63, 1
        %s622 = smul.addr %s621, 8
        %s623 = scalar_lea.vmem [#allocation3], %s622
        // Predicated region
        $region81: #{tpu_custom_call.1} parent=79 // pred_check
          %p624 = pneg %p76
        $region82: #{tpu_custom_call.1} parent=79 // pred_check_branch
          %626 = sbr.rel (%p624) target = $region84
        $region83: #{tpu_custom_call.1} parent=79 // pred_region
          %627 = dma.done %s620, 128
        $region84: #{tpu_custom_call.1} parent=79 // pred_fallthru
          _
        %s628 = sand.u32 %s41, 1
        %s629 = scalar_lea.sflag [#allocation7], %s628
        %s630 = sand.u32 %s89, 1
        %s631 = smul.addr %s630, 8
        %s632 = scalar_lea.vmem [#allocation6], %s631
        // Predicated region
        $region85: #{tpu_custom_call.1} parent=79 // pred_check
          %p633 = pneg %p102
        $region86: #{tpu_custom_call.1} parent=79 // pred_check_branch
          %635 = sbr.rel (%p633) target = $region88
        $region87: #{tpu_custom_call.1} parent=79 // pred_region
          %636 = dma.done %s629, 128
        $region88: #{tpu_custom_call.1} parent=79 // pred_fallthru
          _
        // Predicated region
        $region89: #{tpu_custom_call.1} parent=79 // pred_check
          %p637 = pneg %p123
        $region90: #{tpu_custom_call.1} parent=79 // pred_check_branch
          %639 = sbr.rel (%p637) target = $region92
        $region91: #{tpu_custom_call.1} parent=79 // pred_region
          %640 = dma.done [#allocation7], 512
        $region92: #{tpu_custom_call.1} parent=79 // pred_fallthru
          _
        // Predicated region
        $region93: #{tpu_custom_call.1} parent=79 // pred_check
          %p641 = pneg %p144
        $region94: #{tpu_custom_call.1} parent=79 // pred_check_branch
          %643 = sbr.rel (%p641) target = $region96
        $region95: #{tpu_custom_call.1} parent=79 // pred_region
          %644 = dma.done [#allocation10], 256
        $region96: #{tpu_custom_call.1} parent=79 // pred_fallthru
          _
        // Predicated region
        $region97: #{tpu_custom_call.1} parent=79 // pred_check
          %p645 = pneg %p165
        $region98: #{tpu_custom_call.1} parent=79 // pred_check_branch
          %647 = sbr.rel (%p645) target = $region100
        $region99: #{tpu_custom_call.1} parent=79 // pred_region
          %648 = dma.done [#allocation10], 16
        $region100: #{tpu_custom_call.1} parent=79 // pred_fallthru
          _
        // Predicated region
        $region101: #{tpu_custom_call.1} parent=79 // pred_check
          %p649 = pneg %p186
        $region102: #{tpu_custom_call.1} parent=79 // pred_check_branch
          %651 = sbr.rel (%p649) target = $region104
        $region103: #{tpu_custom_call.1} parent=79 // pred_region
          %652 = dma.done [#allocation13], 192
        $region104: #{tpu_custom_call.1} parent=79 // pred_fallthru
          _
        // Predicated region
        $region105: #{tpu_custom_call.1} parent=79 // pred_check
          %p653 = pneg %p207
        $region106: #{tpu_custom_call.1} parent=79 // pred_check_branch
          %655 = sbr.rel (%p653) target = $region108
        $region107: #{tpu_custom_call.1} parent=79 // pred_region
          %656 = dma.done [#allocation13], 16
        $region108: #{tpu_custom_call.1} parent=79 // pred_fallthru
          _
        // Predicated region
        $region109: #{tpu_custom_call.1} parent=79 // pred_check
          %p657 = pneg %p228
        $region110: #{tpu_custom_call.1} parent=79 // pred_check_branch
          %659 = sbr.rel (%p657) target = $region112
        $region111: #{tpu_custom_call.1} parent=79 // pred_region
          %660 = dma.done [#allocation16], 192
        $region112: #{tpu_custom_call.1} parent=79 // pred_fallthru
          _
        // Predicated region
        $region113: #{tpu_custom_call.1} parent=79 // pred_check
          %p661 = pneg %p249
        $region114: #{tpu_custom_call.1} parent=79 // pred_check_branch
          %663 = sbr.rel (%p661) target = $region116
        $region115: #{tpu_custom_call.1} parent=79 // pred_region
          %664 = dma.done [#allocation16], 16
        $region116: #{tpu_custom_call.1} parent=79 // pred_fallthru
          _
        // Predicated region
        $region117: #{tpu_custom_call.1} parent=79 // pred_check
          %p665 = pneg %p270
        $region118: #{tpu_custom_call.1} parent=79 // pred_check_branch
          %667 = sbr.rel (%p665) target = $region120
        $region119: #{tpu_custom_call.1} parent=79 // pred_region
          %668 = dma.done [#allocation19], 256
        $region120: #{tpu_custom_call.1} parent=79 // pred_fallthru
          _
        // Predicated region
        $region121: #{tpu_custom_call.1} parent=79 // pred_check
          %p669 = pneg %p291
        $region122: #{tpu_custom_call.1} parent=79 // pred_check_branch
          %671 = sbr.rel (%p669) target = $region124
        $region123: #{tpu_custom_call.1} parent=79 // pred_region
          %672 = dma.done [#allocation19], 16
        $region124: #{tpu_custom_call.1} parent=79 // pred_fallthru
          _
        // Predicated region
        $region125: #{tpu_custom_call.1} parent=79 // pred_check
          %p673 = pneg %p312
        $region126: #{tpu_custom_call.1} parent=79 // pred_check_branch
          %675 = sbr.rel (%p673) target = $region128
        $region127: #{tpu_custom_call.1} parent=79 // pred_region
          %676 = dma.done [#allocation22], 16
        $region128: #{tpu_custom_call.1} parent=79 // pred_fallthru
          _
        // Predicated region
        $region129: #{tpu_custom_call.1} parent=79 // pred_check
          %p677 = pneg %p333
        $region130: #{tpu_custom_call.1} parent=79 // pred_check_branch
          %679 = sbr.rel (%p677) target = $region132
        $region131: #{tpu_custom_call.1} parent=79 // pred_region
          %680 = dma.done [#allocation22], 16
        $region132: #{tpu_custom_call.1} parent=79 // pred_fallthru
          _
        // Predicated region
        $region133: #{tpu_custom_call.1} parent=79 // pred_check
          %p681 = pneg %p354
        $region134: #{tpu_custom_call.1} parent=79 // pred_check_branch
          %683 = sbr.rel (%p681) target = $region136
        $region135: #{tpu_custom_call.1} parent=79 // pred_region
          %684 = dma.done [#allocation25], 16
        $region136: #{tpu_custom_call.1} parent=79 // pred_fallthru
          _
        // Predicated region
        $region137: #{tpu_custom_call.1} parent=79 // pred_check
          %p685 = pneg %p375
        $region138: #{tpu_custom_call.1} parent=79 // pred_check_branch
          %687 = sbr.rel (%p685) target = $region140
        $region139: #{tpu_custom_call.1} parent=79 // pred_region
          %688 = dma.done [#allocation25], 16
        $region140: #{tpu_custom_call.1} parent=79 // pred_fallthru
          _
        %s689 = sand.u32 %s63, 1
        %s690 = scalar_lea.sflag [#allocation4], %s689
        %s691 = sand.u32 %s63, 1
        %s692 = smul.addr %s691, 8
        %s693 = scalar_lea.vmem [#allocation3], %s692
        %p694 = pneg %p76
        %p695 = pneg %p73
        %s696 = sand.u32 %s41, 1
        %s697 = scalar_lea.sflag [#allocation7], %s696
        %s698 = sand.u32 %s89, 1
        %s699 = smul.addr %s698, 8
        %s700 = scalar_lea.vmem [#allocation6], %s699
        %p701 = pneg %p102
        %p702 = pneg %p99
        %p703 = pneg %p123
        %p704 = pneg %p120
        %p705 = pneg %p144
        %p706 = pneg %p141
        %p707 = pneg %p165
        %p708 = pneg %p162
        %p709 = pneg %p186
        %p710 = pneg %p183
        %p711 = pneg %p207
        %p712 = pneg %p204
        %p713 = pneg %p228
        %p714 = pneg %p225
        %p715 = pneg %p249
        %p716 = pneg %p246
        %p717 = pneg %p270
        %p718 = pneg %p267
        %p719 = pneg %p291
        %p720 = pneg %p288
        %p721 = pneg %p312
        %p722 = pneg %p309
        %p723 = pneg %p333
        %p724 = pneg %p330
        %p725 = pneg %p354
        %p726 = pneg %p351
        %p727 = pneg %p375
        %p728 = pneg %p372
        %p729 = pneg %p403
        %p730 = pneg %p400
        %s731 = sand.u32 %s390, 1
        %s732 = scalar_lea.sflag [#allocation5], %s731
        %s733 = sand.u32 %s390, 1
        %s734 = smul.addr %s733, 8
        %s735 = scalar_lea.vmem [#allocation27], %s734
        %v737 = vld [vmem:[#allocation8] sm:$0xff]
        %v738 = vld [vmem:[#allocation8 + $0x8] sm:$0xff]
        %v739 = vld [vmem:[#allocation8 + $0x10] sm:$0xff]
        %v740 = vld [vmem:[#allocation8 + $0x18] sm:$0xff]
        %p741 = scmp.eq.s32.totalorder %s46, 0
        // Predicated region
        $region141: #{tpu_custom_call.1} parent=79 // pred_check
          %p742 = pneg %p741
        $region142: #{tpu_custom_call.1} parent=79 // pred_check_branch
          %744 = sbr.rel (%p742) target = $region144
        $region143: #{tpu_custom_call.1} parent=79 // pred_region
          %v745 = vld [vmem:[%s632] sm:$0xff]
          %v746 = vld [vmem:[#allocation24] sm:$0x1]
          %v747 = vld [vmem:[#allocation26] sm:$0x1]
          %vm748 = vcmask 195584
          %v749 = vsel %vm748, %v745, 0.0
          %750 = vadd.xlane.f32.xlu0 %v749
          %v751 = vpop.xlane.xlu0 %750
          %v752 = vrcp.pop 24.0
          %v753 = vmul.f32 %v751, %v752
          %v754 = vsub.f32 %v745, %v753
          %v755 = vmul.f32 %v754, %v754
          %v756 = vsel %vm748, %v755, 0.0
          %757 = vadd.xlane.f32.xlu0 %v756
          %v758 = vpop.xlane.xlu0 %757
          %v759 = vmul.f32 %v758, %v752
          %v760 = vadd.f32 %v759, 1e-05
          %v761 = vrsqrt.pop %v760
          %v762 = vmul.f32 %v754, %v761
          %v764 = vlaneseq
          %v765 = vshrl.u32 %v764, 7
          %v766 = vsub.s32 0, %v765
          %v767 = vrot.slane %v746, %v766
          %v769 = vmul.f32 %v762, %v767
          %v771 = vlaneseq
          %v772 = vshrl.u32 %v771, 7
          %v773 = vsub.s32 0, %v772
          %v774 = vrot.slane %v747, %v773
          %v776 = vadd.f32 %v769, %v774
          %v777 = vpack.c.bf16 %v776, %v776
          %v778 = vld [vmem:[#allocation12] sm:$0xf]
          %v779 = vld [vmem:[#allocation12 + $0x4] sm:$0xf]
          %v780 = vld [vmem:[#allocation12 + $0x8] sm:$0xf]
          %v781 = vld [vmem:[#allocation14] sm:$0x1]
          %v783 = vlaneseq
          %v784 = vshrl.u32 %v783, 7
          %v785 = vsub.s32 0, %v784
          %v786 = vrot.slane %v781, %v785
          %v791 = vunpack.c.l.b16 %v778
          %v792 = vunpack.c.l.b16 %v779
          %v793 = vunpack.c.l.b16 %v780
          %v794 = vpack.c.b16 %v792, %v791
          %v795 = vpack.c.b16 %v793, %v793
          %v798 = vsel %vm748, %v777, 0
          %vm800 = vcmask 1043456
          %v802 = vsel %vm800, %v795, 0
          %804 = vmatprep.subr.bf16.mxu0 0
          %805 = vmatpush1.bf16.msra.mxu0 %v794
          %806 = vmatprep.subr.bf16.mxu0 0
          %807 = vmatpush1.bf16.msra.mxu0 %v802
          %808 = vmatprep.subr.bf16.mxu0 0
          %809 = vmatpush1.bf16.msra.mxu0 0
          %810 = vmatprep.subr.bf16.mxu0 0
          %811 = vmatpush1.bf16.msra.mxu0 0
          %812 = vmatprep.subr.bf16.mxu0 0
          %813 = vmatpush1.bf16.msra.mxu0 0
          %814 = vmatprep.subr.bf16.mxu0 0
          %815 = vmatpush1.bf16.msra.mxu0 0
          %816 = vmatprep.subr.bf16.mxu0 0
          %817 = vmatpush1.bf16.msra.mxu0 0
          %818 = vmatprep.subr.bf16.mxu0 0
          %819 = vmatpush1.bf16.msra.mxu0 0
          %820 = vmatprep.subr.bf16.mxu0 0
          %821 = vmatpush1.bf16.msra.mxu0 0
          %822 = vmatprep.subr.bf16.mxu0 0
          %823 = vmatpush1.bf16.msra.mxu0 0
          %824 = vmatprep.subr.bf16.mxu0 0
          %825 = vmatpush1.bf16.msra.mxu0 0
          %826 = vmatprep.subr.bf16.mxu0 0
          %827 = vmatpush1.bf16.msra.mxu0 0
          %828 = vmatprep.subr.bf16.mxu0 0
          %829 = vmatpush1.bf16.msra.mxu0 0
          %830 = vmatprep.subr.bf16.mxu0 0
          %831 = vmatpush1.bf16.msra.mxu0 0
          %832 = vmatprep.subr.bf16.mxu0 0
          %833 = vmatpush1.bf16.msra.mxu0 0
          %834 = vmatprep.subr.bf16.mxu0 0
          %835 = vmatpush1.bf16.msra.mxu0 0
          %836 = vmatprep.mubr.bf16.mxu0 0
          %837 = vmatmul.mubr.bf16.gmra.mrb[0].mxu0 %v798
          %v838 = vpop.f32.mrb[0].mxu0
          %v839 = vadd.f32 %v786, %v838
          %v840 = vpop.f32.mrb[0].mxu0
          %v841 = vpop.f32.mrb[0].mxu0
          %v842 = vpop.f32.mrb[0].mxu0
          %843 = vdwg.mxu0
          %v844 = vld [vmem:[#allocation15] sm:$0xf]
          %v845 = vld [vmem:[#allocation15 + $0x4] sm:$0xf]
          %v846 = vld [vmem:[#allocation15 + $0x8] sm:$0xf]
          %v847 = vld [vmem:[#allocation17] sm:$0x1]
          %v849 = vlaneseq
          %v850 = vshrl.u32 %v849, 7
          %v851 = vsub.s32 0, %v850
          %v852 = vrot.slane %v847, %v851
          %v857 = vunpack.c.l.b16 %v844
          %v858 = vunpack.c.l.b16 %v845
          %v859 = vunpack.c.l.b16 %v846
          %v860 = vpack.c.b16 %v858, %v857
          %v861 = vpack.c.b16 %v859, %v859
          %v864 = vsel %vm800, %v861, 0
          %866 = vmatprep.subr.bf16.mxu0 0
          %867 = vmatpush1.bf16.msra.mxu0 %v860
          %868 = vmatprep.subr.bf16.mxu0 0
          %869 = vmatpush1.bf16.msra.mxu0 %v864
          %870 = vmatprep.subr.bf16.mxu0 0
          %871 = vmatpush1.bf16.msra.mxu0 0
          %872 = vmatprep.subr.bf16.mxu0 0
          %873 = vmatpush1.bf16.msra.mxu0 0
          %874 = vmatprep.subr.bf16.mxu0 0
          %875 = vmatpush1.bf16.msra.mxu0 0
          %876 = vmatprep.subr.bf16.mxu0 0
          %877 = vmatpush1.bf16.msra.mxu0 0
          %878 = vmatprep.subr.bf16.mxu0 0
          %879 = vmatpush1.bf16.msra.mxu0 0
          %880 = vmatprep.subr.bf16.mxu0 0
          %881 = vmatpush1.bf16.msra.mxu0 0
          %882 = vmatprep.subr.bf16.mxu0 0
          %883 = vmatpush1.bf16.msra.mxu0 0
          %884 = vmatprep.subr.bf16.mxu0 0
          %885 = vmatpush1.bf16.msra.mxu0 0
          %886 = vmatprep.subr.bf16.mxu0 0
          %887 = vmatpush1.bf16.msra.mxu0 0
          %888 = vmatprep.subr.bf16.mxu0 0
          %889 = vmatpush1.bf16.msra.mxu0 0
          %890 = vmatprep.subr.bf16.mxu0 0
          %891 = vmatpush1.bf16.msra.mxu0 0
          %892 = vmatprep.subr.bf16.mxu0 0
          %893 = vmatpush1.bf16.msra.mxu0 0
          %894 = vmatprep.subr.bf16.mxu0 0
          %895 = vmatpush1.bf16.msra.mxu0 0
          %896 = vmatprep.subr.bf16.mxu0 0
          %897 = vmatpush1.bf16.msra.mxu0 0
          %898 = vmatprep.mubr.bf16.mxu0 0
          %899 = vmatmul.mubr.bf16.gmra.mrb[0].mxu0 %v798
          %v900 = vpop.f32.mrb[0].mxu0
          %v901 = vadd.f32 %v852, %v900
          %v902 = vpop.f32.mrb[0].mxu0
          %v903 = vpop.f32.mrb[0].mxu0
          %v904 = vpop.f32.mrb[0].mxu0
          %905 = vdwg.mxu0
          %vm906 = vcmask 261120
          %v907 = vsel %vm906, %v839, -inf
          %908 = vmax.xlane.f32.xlu0 %v907
          %v909 = vpop.xlane.xlu0 %908
          %v910 = vsub.f32 %v839, %v909
          %v911 = vmul.f32 %v910, 1.442695
          %v912 = vpow.pop %v911
          %v914 = vsel %vm906, %v912, 0
          %916 = vmatprep.subr.mxu0 0.0
          %917 = vmatpush1.msra.mxu0 %v737
          %918 = vmatprep.subr.mxu0 0.0
          %919 = vmatpush1.msra.mxu0 %v738
          %920 = vmatprep.subr.mxu0 0.0
          %921 = vmatpush1.msra.mxu0 %v739
          %922 = vmatprep.subr.mxu0 0.0
          %923 = vmatpush1.msra.mxu0 %v740
          %924 = vmatprep.subr.mxu0 0.0
          %925 = vmatpush1.msra.mxu0 0.0
          %926 = vmatprep.subr.mxu0 0.0
          %927 = vmatpush1.msra.mxu0 0.0
          %928 = vmatprep.subr.mxu0 0.0
          %929 = vmatpush1.msra.mxu0 0.0
          %930 = vmatprep.subr.mxu0 0.0
          %931 = vmatpush1.msra.mxu0 0.0
          %932 = vmatprep.subr.mxu0 0.0
          %933 = vmatpush1.msra.mxu0 0.0
          %934 = vmatprep.subr.mxu0 0.0
          %935 = vmatpush1.msra.mxu0 0.0
          %936 = vmatprep.subr.mxu0 0.0
          %937 = vmatpush1.msra.mxu0 0.0
          %938 = vmatprep.subr.mxu0 0.0
          %939 = vmatpush1.msra.mxu0 0.0
          %940 = vmatprep.subr.mxu0 0.0
          %941 = vmatpush1.msra.mxu0 0.0
          %942 = vmatprep.subr.mxu0 0.0
          %943 = vmatpush1.msra.mxu0 0.0
          %944 = vmatprep.subr.mxu0 0.0
          %945 = vmatpush1.msra.mxu0 0.0
          %946 = vmatprep.subr.mxu0 0.0
          %947 = vmatpush1.msra.mxu0 0.0
          %948 = vmatprep.subr.mxu0 0.0
          %949 = vmatpush1.msra.mxu0 0.0
          %950 = vmatprep.subr.mxu0 0.0
          %951 = vmatpush1.msra.mxu0 0.0
          %952 = vmatprep.subr.mxu0 0.0
          %953 = vmatpush1.msra.mxu0 0.0
          %954 = vmatprep.subr.mxu0 0.0
          %955 = vmatpush1.msra.mxu0 0.0
          %956 = vmatprep.subr.mxu0 0.0
          %957 = vmatpush1.msra.mxu0 0.0
          %958 = vmatprep.subr.mxu0 0.0
          %959 = vmatpush1.msra.mxu0 0.0
          %960 = vmatprep.subr.mxu0 0.0
          %961 = vmatpush1.msra.mxu0 0.0
          %962 = vmatprep.subr.mxu0 0.0
          %963 = vmatpush1.msra.mxu0 0.0
          %964 = vmatprep.subr.mxu0 0.0
          %965 = vmatpush1.msra.mxu0 0.0
          %966 = vmatprep.subr.mxu0 0.0
          %967 = vmatpush1.msra.mxu0 0.0
          %968 = vmatprep.subr.mxu0 0.0
          %969 = vmatpush1.msra.mxu0 0.0
          %970 = vmatprep.subr.mxu0 0.0
          %971 = vmatpush1.msra.mxu0 0.0
          %972 = vmatprep.subr.mxu0 0.0
          %973 = vmatpush1.msra.mxu0 0.0
          %974 = vmatprep.subr.mxu0 0.0
          %975 = vmatpush1.msra.mxu0 0.0
          %976 = vmatprep.subr.mxu0 0.0
          %977 = vmatpush1.msra.mxu0 0.0
          %978 = vmatprep.subr.mxu0 0.0
          %979 = vmatpush1.msra.mxu0 0.0
          %980 = vmatprep.mubr.f32.mxu0 0.0
          %981 = vmatmul.mubr.f32.gmra.mrb[0].mxu0 %v914
          %v982 = vpop.f32.mrb[0].mxu0
          %v983 = vadd.f32 0.0, %v982
          %v984 = vpop.f32.mrb[0].mxu0
          %985 = vdwg.mxu0
          %v986 = vrcp.pop %v983
          %v987 = vmul.f32 %v912, %v986
          %v988 = vpack.c.bf16 %v987, %v987
          %v989 = vpack.c.bf16 %v901, %v901
          %990 = vxpose.xlu0.c.b16.start [1/8] %v988, 128
          %991 = vxpose.xlu0.c.b16.cont [2/8] 0, 128
          %992 = vxpose.xlu0.c.b16.cont [3/8] 0, 128
          %993 = vxpose.xlu0.c.b16.cont [4/8] 0, 128
          %994 = vxpose.xlu0.c.b16.cont [5/8] 0, 128
          %995 = vxpose.xlu0.c.b16.cont [6/8] 0, 128
          %996 = vxpose.xlu0.c.b16.cont [7/8] 0, 128
          %997 = vxpose.xlu0.c.b16.end [8/8] 0, 128
          %v998 = vpop.trf.xlu0
          %v999 = vpop.trf.xlu0
          %v1000 = vpop.trf.xlu0
          %v1001 = vpop.trf.xlu0
          %v1002 = vpop.trf.xlu0
          %v1003 = vpop.trf.xlu0
          %v1004 = vpop.trf.xlu0
          %v1005 = vpop.trf.xlu0
          %vm1006 = vcmask 64512
          %v1008 = vsel %vm1006, %v998, 0
          %v1011 = vsel %vm1006, %v999, 0
          %v1014 = vsel %vm800, %v989, 0
          %1016 = vmatprep.subr.bf16.mxu0 0
          %1017 = vmatpush1.bf16.msra.mxu0 %v1014
          %1018 = vmatprep.subr.bf16.mxu0 0
          %1019 = vmatpush1.bf16.msra.mxu0 0
          %1020 = vmatprep.subr.bf16.mxu0 0
          %1021 = vmatpush1.bf16.msra.mxu0 0
          %1022 = vmatprep.subr.bf16.mxu0 0
          %1023 = vmatpush1.bf16.msra.mxu0 0
          %1024 = vmatprep.subr.bf16.mxu0 0
          %1025 = vmatpush1.bf16.msra.mxu0 0
          %1026 = vmatprep.subr.bf16.mxu0 0
          %1027 = vmatpush1.bf16.msra.mxu0 0
          %1028 = vmatprep.subr.bf16.mxu0 0
          %1029 = vmatpush1.bf16.msra.mxu0 0
          %1030 = vmatprep.subr.bf16.mxu0 0
          %1031 = vmatpush1.bf16.msra.mxu0 0
          %1032 = vmatprep.subr.bf16.mxu0 0
          %1033 = vmatpush1.bf16.msra.mxu0 0
          %1034 = vmatprep.subr.bf16.mxu0 0
          %1035 = vmatpush1.bf16.msra.mxu0 0
          %1036 = vmatprep.subr.bf16.mxu0 0
          %1037 = vmatpush1.bf16.msra.mxu0 0
          %1038 = vmatprep.subr.bf16.mxu0 0
          %1039 = vmatpush1.bf16.msra.mxu0 0
          %1040 = vmatprep.subr.bf16.mxu0 0
          %1041 = vmatpush1.bf16.msra.mxu0 0
          %1042 = vmatprep.subr.bf16.mxu0 0
          %1043 = vmatpush1.bf16.msra.mxu0 0
          %1044 = vmatprep.subr.bf16.mxu0 0
          %1045 = vmatpush1.bf16.msra.mxu0 0
          %1046 = vmatprep.subr.bf16.mxu0 0
          %1047 = vmatpush1.bf16.msra.mxu0 0
          %1048 = vmatprep.mubr.bf16.mxu0 0
          %1049 = vmatmul.mubr.bf16.gmra.mrb[0].mxu0 %v1008
          %v1050 = vpop.f32.mrb[0].mxu0
          %v1051 = vadd.f32 0.0, %v1050
          %v1052 = vpop.f32.mrb[0].mxu0
          %v1053 = vpop.f32.mrb[0].mxu0
          %v1054 = vadd.f32 0.0, %v1053
          %v1055 = vpop.f32.mrb[0].mxu0
          %1056 = vmatprep.mubr.bf16.mxu0 0
          %1057 = vmatmul.mubr.bf16.gmra.mrb[0].mxu0 %v1011
          %v1058 = vpop.f32.mrb[0].mxu0
          %v1059 = vadd.f32 0.0, %v1058
          %v1060 = vpop.f32.mrb[0].mxu0
          %v1061 = vpop.f32.mrb[0].mxu0
          %v1062 = vadd.f32 0.0, %v1061
          %v1063 = vpop.f32.mrb[0].mxu0
          %1064 = vdwg.mxu0
          %v1065 = vmul.f32 %v1051, %v737
          %v1066 = vmul.f32 %v1054, %v738
          %v1067 = vmul.f32 %v1059, %v739
          %v1068 = vmul.f32 %v1062, %v740
          %v1069 = vpack.c.bf16 %v1066, %v1065
          %v1070 = vpack.c.bf16 %v1068, %v1067
          %1071 = vst.msk [vmem:[#allocation2] sm:$0xff] %vm906, %v1069
          %1072 = vst.msk [vmem:[#allocation2 + $0x8] sm:$0xff] %vm906, %v1070
        $region144: #{tpu_custom_call.1} parent=79 // pred_fallthru
          _
        %v1073 = vld [vmem:[%s623] sm:$0xff]
        %v1074 = vld [vmem:[#allocation21] sm:$0x1]
        %v1075 = vld [vmem:[#allocation23] sm:$0x1]
        %vm1076 = vcmask 261120
        %v1077 = vsel %vm1076, %v1073, 0.0
        %1078 = vadd.xlane.f32.xlu0 %v1077
        %v1079 = vpop.xlane.xlu0 %1078
        %v1080 = vrcp.pop 32.0
        %v1081 = vmul.f32 %v1079, %v1080
        %v1082 = vsub.f32 %v1073, %v1081
        %v1083 = vmul.f32 %v1082, %v1082
        %v1084 = vsel %vm1076, %v1083, 0.0
        %1085 = vadd.xlane.f32.xlu0 %v1084
        %v1086 = vpop.xlane.xlu0 %1085
        %v1087 = vmul.f32 %v1086, %v1080
        %v1088 = vadd.f32 %v1087, 1e-05
        %v1089 = vrsqrt.pop %v1088
        %v1090 = vmul.f32 %v1082, %v1089
        %v1092 = vlaneseq
        %v1093 = vshrl.u32 %v1092, 7
        %v1094 = vsub.s32 0, %v1093
        %v1095 = vrot.slane %v1074, %v1094
        %v1097 = vmul.f32 %v1090, %v1095
        %v1099 = vlaneseq
        %v1100 = vshrl.u32 %v1099, 7
        %v1101 = vsub.s32 0, %v1100
        %v1102 = vrot.slane %v1075, %v1101
        %v1104 = vadd.f32 %v1097, %v1102
        %v1105 = vpack.c.bf16 %v1104, %v1104
        %v1106 = vld [vmem:[#allocation9] sm:$0xf]
        %v1107 = vld [vmem:[#allocation9 + $0x4] sm:$0xf]
        %v1108 = vld [vmem:[#allocation9 + $0x8] sm:$0xf]
        %v1109 = vld [vmem:[#allocation9 + $0xc] sm:$0xf]
        %v1110 = vld [vmem:[#allocation11] sm:$0x1]
        %v1112 = vlaneseq
        %v1113 = vshrl.u32 %v1112, 7
        %v1114 = vsub.s32 0, %v1113
        %v1115 = vrot.slane %v1110, %v1114
        %v1121 = vunpack.c.l.b16 %v1106
        %v1122 = vunpack.c.l.b16 %v1107
        %v1123 = vunpack.c.l.b16 %v1108
        %v1124 = vunpack.c.l.b16 %v1109
        %v1125 = vpack.c.b16 %v1122, %v1121
        %v1126 = vpack.c.b16 %v1124, %v1123
        %v1130 = vsel %vm1076, %v1105, 0
        %1132 = vmatprep.subr.bf16.mxu0 0
        %1133 = vmatpush1.bf16.msra.mxu0 %v1125
        %1134 = vmatprep.subr.bf16.mxu0 0
        %1135 = vmatpush1.bf16.msra.mxu0 %v1126
        %1136 = vmatprep.subr.bf16.mxu0 0
        %1137 = vmatpush1.bf16.msra.mxu0 0
        %1138 = vmatprep.subr.bf16.mxu0 0
        %1139 = vmatpush1.bf16.msra.mxu0 0
        %1140 = vmatprep.subr.bf16.mxu0 0
        %1141 = vmatpush1.bf16.msra.mxu0 0
        %1142 = vmatprep.subr.bf16.mxu0 0
        %1143 = vmatpush1.bf16.msra.mxu0 0
        %1144 = vmatprep.subr.bf16.mxu0 0
        %1145 = vmatpush1.bf16.msra.mxu0 0
        %1146 = vmatprep.subr.bf16.mxu0 0
        %1147 = vmatpush1.bf16.msra.mxu0 0
        %1148 = vmatprep.subr.bf16.mxu0 0
        %1149 = vmatpush1.bf16.msra.mxu0 0
        %1150 = vmatprep.subr.bf16.mxu0 0
        %1151 = vmatpush1.bf16.msra.mxu0 0
        %1152 = vmatprep.subr.bf16.mxu0 0
        %1153 = vmatpush1.bf16.msra.mxu0 0
        %1154 = vmatprep.subr.bf16.mxu0 0
        %1155 = vmatpush1.bf16.msra.mxu0 0
        %1156 = vmatprep.subr.bf16.mxu0 0
        %1157 = vmatpush1.bf16.msra.mxu0 0
        %1158 = vmatprep.subr.bf16.mxu0 0
        %1159 = vmatpush1.bf16.msra.mxu0 0
        %1160 = vmatprep.subr.bf16.mxu0 0
        %1161 = vmatpush1.bf16.msra.mxu0 0
        %1162 = vmatprep.subr.bf16.mxu0 0
        %1163 = vmatpush1.bf16.msra.mxu0 0
        %1164 = vmatprep.mubr.bf16.mxu0 0
        %1165 = vmatmul.mubr.bf16.gmra.mrb[0].mxu0 %v1130
        %v1166 = vpop.f32.mrb[0].mxu0
        %v1167 = vadd.f32 %v1115, %v1166
        %v1168 = vpop.f32.mrb[0].mxu0
        %v1169 = vpop.f32.mrb[0].mxu0
        %v1170 = vpop.f32.mrb[0].mxu0
        %1171 = vdwg.mxu0
        %v1172 = vsel %vm1076, %v1167, -inf
        %1173 = vmax.xlane.f32.xlu0 %v1172
        %v1174 = vpop.xlane.xlu0 %1173
        %v1175 = vsub.f32 %v1167, %v1174
        %v1176 = vmul.f32 %v1175, 1.442695
        %v1177 = vpow.pop %v1176
        %v1179 = vsel %vm1076, %v1177, 0
        %1181 = vmatprep.subr.mxu0 0.0
        %1182 = vmatpush1.msra.mxu0 %v737
        %1183 = vmatprep.subr.mxu0 0.0
        %1184 = vmatpush1.msra.mxu0 %v738
        %1185 = vmatprep.subr.mxu0 0.0
        %1186 = vmatpush1.msra.mxu0 %v739
        %1187 = vmatprep.subr.mxu0 0.0
        %1188 = vmatpush1.msra.mxu0 %v740
        %1189 = vmatprep.subr.mxu0 0.0
        %1190 = vmatpush1.msra.mxu0 0.0
        %1191 = vmatprep.subr.mxu0 0.0
        %1192 = vmatpush1.msra.mxu0 0.0
        %1193 = vmatprep.subr.mxu0 0.0
        %1194 = vmatpush1.msra.mxu0 0.0
        %1195 = vmatprep.subr.mxu0 0.0
        %1196 = vmatpush1.msra.mxu0 0.0
        %1197 = vmatprep.subr.mxu0 0.0
        %1198 = vmatpush1.msra.mxu0 0.0
        %1199 = vmatprep.subr.mxu0 0.0
        %1200 = vmatpush1.msra.mxu0 0.0
        %1201 = vmatprep.subr.mxu0 0.0
        %1202 = vmatpush1.msra.mxu0 0.0
        %1203 = vmatprep.subr.mxu0 0.0
        %1204 = vmatpush1.msra.mxu0 0.0
        %1205 = vmatprep.subr.mxu0 0.0
        %1206 = vmatpush1.msra.mxu0 0.0
        %1207 = vmatprep.subr.mxu0 0.0
        %1208 = vmatpush1.msra.mxu0 0.0
        %1209 = vmatprep.subr.mxu0 0.0
        %1210 = vmatpush1.msra.mxu0 0.0
        %1211 = vmatprep.subr.mxu0 0.0
        %1212 = vmatpush1.msra.mxu0 0.0
        %1213 = vmatprep.subr.mxu0 0.0
        %1214 = vmatpush1.msra.mxu0 0.0
        %1215 = vmatprep.subr.mxu0 0.0
        %1216 = vmatpush1.msra.mxu0 0.0
        %1217 = vmatprep.subr.mxu0 0.0
        %1218 = vmatpush1.msra.mxu0 0.0
        %1219 = vmatprep.subr.mxu0 0.0
        %1220 = vmatpush1.msra.mxu0 0.0
        %1221 = vmatprep.subr.mxu0 0.0
        %1222 = vmatpush1.msra.mxu0 0.0
        %1223 = vmatprep.subr.mxu0 0.0
        %1224 = vmatpush1.msra.mxu0 0.0
        %1225 = vmatprep.subr.mxu0 0.0
        %1226 = vmatpush1.msra.mxu0 0.0
        %1227 = vmatprep.subr.mxu0 0.0
        %1228 = vmatpush1.msra.mxu0 0.0
        %1229 = vmatprep.subr.mxu0 0.0
        %1230 = vmatpush1.msra.mxu0 0.0
        %1231 = vmatprep.subr.mxu0 0.0
        %1232 = vmatpush1.msra.mxu0 0.0
        %1233 = vmatprep.subr.mxu0 0.0
        %1234 = vmatpush1.msra.mxu0 0.0
        %1235 = vmatprep.subr.mxu0 0.0
        %1236 = vmatpush1.msra.mxu0 0.0
        %1237 = vmatprep.subr.mxu0 0.0
        %1238 = vmatpush1.msra.mxu0 0.0
        %1239 = vmatprep.subr.mxu0 0.0
        %1240 = vmatpush1.msra.mxu0 0.0
        %1241 = vmatprep.subr.mxu0 0.0
        %1242 = vmatpush1.msra.mxu0 0.0
        %1243 = vmatprep.subr.mxu0 0.0
        %1244 = vmatpush1.msra.mxu0 0.0
        %1245 = vmatprep.mubr.f32.mxu0 0.0
        %1246 = vmatmul.mubr.f32.gmra.mrb[0].mxu0 %v1179
        %v1247 = vpop.f32.mrb[0].mxu0
        %v1248 = vadd.f32 0.0, %v1247
        %v1249 = vpop.f32.mrb[0].mxu0
        %1250 = vdwg.mxu0
        %v1251 = vrcp.pop %v1248
        %v1252 = vmul.f32 %v1177, %v1251
        %v1253 = vpack.c.bf16 %v1252, %v1252
        %v1254 = vld [vmem:[#allocation2] sm:$0xff]
        %v1255 = vld [vmem:[#allocation2 + $0x8] sm:$0xff]
        %v1257 = vsel %vm1076, %v1253, 0
        %1259 = vmatprep.subr.bf16.mxu0 0
        %1260 = vmatpush1.bf16.msra.mxu0 %v1254
        %1261 = vmatprep.subr.bf16.mxu0 0
        %1262 = vmatpush1.bf16.msra.mxu0 %v1255
        %1263 = vmatprep.subr.bf16.mxu0 0
        %1264 = vmatpush1.bf16.msra.mxu0 0
        %1265 = vmatprep.subr.bf16.mxu0 0
        %1266 = vmatpush1.bf16.msra.mxu0 0
        %1267 = vmatprep.subr.bf16.mxu0 0
        %1268 = vmatpush1.bf16.msra.mxu0 0
        %1269 = vmatprep.subr.bf16.mxu0 0
        %1270 = vmatpush1.bf16.msra.mxu0 0
        %1271 = vmatprep.subr.bf16.mxu0 0
        %1272 = vmatpush1.bf16.msra.mxu0 0
        %1273 = vmatprep.subr.bf16.mxu0 0
        %1274 = vmatpush1.bf16.msra.mxu0 0
        %1275 = vmatprep.subr.bf16.mxu0 0
        %1276 = vmatpush1.bf16.msra.mxu0 0
        %1277 = vmatprep.subr.bf16.mxu0 0
        %1278 = vmatpush1.bf16.msra.mxu0 0
        %1279 = vmatprep.subr.bf16.mxu0 0
        %1280 = vmatpush1.bf16.msra.mxu0 0
        %1281 = vmatprep.subr.bf16.mxu0 0
        %1282 = vmatpush1.bf16.msra.mxu0 0
        %1283 = vmatprep.subr.bf16.mxu0 0
        %1284 = vmatpush1.bf16.msra.mxu0 0
        %1285 = vmatprep.subr.bf16.mxu0 0
        %1286 = vmatpush1.bf16.msra.mxu0 0
        %1287 = vmatprep.subr.bf16.mxu0 0
        %1288 = vmatpush1.bf16.msra.mxu0 0
        %1289 = vmatprep.subr.bf16.mxu0 0
        %1290 = vmatpush1.bf16.msra.mxu0 0
        %1291 = vmatprep.mubr.bf16.mxu0 0
        %1292 = vmatmul.mubr.bf16.gmra.mrb[0].mxu0 %v1257
        %v1293 = vpop.f32.mrb[0].mxu0
        %v1294 = vadd.f32 0.0, %v1293
        %v1295 = vpop.f32.mrb[0].mxu0
        %v1296 = vpop.f32.mrb[0].mxu0
        %v1297 = vpop.f32.mrb[0].mxu0
        %1298 = vdwg.mxu0
        %v1299 = vpack.c.bf16 %v1073, %v1073
        %v1300 = vld [vmem:[#allocation18] sm:$0xf]
        %v1301 = vld [vmem:[#allocation18 + $0x4] sm:$0xf]
        %v1302 = vld [vmem:[#allocation18 + $0x8] sm:$0xf]
        %v1303 = vld [vmem:[#allocation18 + $0xc] sm:$0xf]
        %v1304 = vld [vmem:[#allocation20] sm:$0x1]
        %v1306 = vlaneseq
        %v1307 = vshrl.u32 %v1306, 7
        %v1308 = vsub.s32 0, %v1307
        %v1309 = vrot.slane %v1304, %v1308
        %v1315 = vunpack.c.l.b16 %v1300
        %v1316 = vunpack.c.l.b16 %v1301
        %v1317 = vunpack.c.l.b16 %v1302
        %v1318 = vunpack.c.l.b16 %v1303
        %v1319 = vpack.c.b16 %v1316, %v1315
        %v1320 = vpack.c.b16 %v1318, %v1317
        %v1324 = vsel %vm1076, %v1299, 0
        %1326 = vmatprep.subr.bf16.mxu0 0
        %1327 = vmatpush1.bf16.msra.mxu0 %v1319
        %1328 = vmatprep.subr.bf16.mxu0 0
        %1329 = vmatpush1.bf16.msra.mxu0 %v1320
        %1330 = vmatprep.subr.bf16.mxu0 0
        %1331 = vmatpush1.bf16.msra.mxu0 0
        %1332 = vmatprep.subr.bf16.mxu0 0
        %1333 = vmatpush1.bf16.msra.mxu0 0
        %1334 = vmatprep.subr.bf16.mxu0 0
        %1335 = vmatpush1.bf16.msra.mxu0 0
        %1336 = vmatprep.subr.bf16.mxu0 0
        %1337 = vmatpush1.bf16.msra.mxu0 0
        %1338 = vmatprep.subr.bf16.mxu0 0
        %1339 = vmatpush1.bf16.msra.mxu0 0
        %1340 = vmatprep.subr.bf16.mxu0 0
        %1341 = vmatpush1.bf16.msra.mxu0 0
        %1342 = vmatprep.subr.bf16.mxu0 0
        %1343 = vmatpush1.bf16.msra.mxu0 0
        %1344 = vmatprep.subr.bf16.mxu0 0
        %1345 = vmatpush1.bf16.msra.mxu0 0
        %1346 = vmatprep.subr.bf16.mxu0 0
        %1347 = vmatpush1.bf16.msra.mxu0 0
        %1348 = vmatprep.subr.bf16.mxu0 0
        %1349 = vmatpush1.bf16.msra.mxu0 0
        %1350 = vmatprep.subr.bf16.mxu0 0
        %1351 = vmatpush1.bf16.msra.mxu0 0
        %1352 = vmatprep.subr.bf16.mxu0 0
        %1353 = vmatpush1.bf16.msra.mxu0 0
        %1354 = vmatprep.subr.bf16.mxu0 0
        %1355 = vmatpush1.bf16.msra.mxu0 0
        %1356 = vmatprep.subr.bf16.mxu0 0
        %1357 = vmatpush1.bf16.msra.mxu0 0
        %1358 = vmatprep.mubr.bf16.mxu0 0
        %1359 = vmatmul.mubr.bf16.gmra.mrb[0].mxu0 %v1324
        %v1360 = vpop.f32.mrb[0].mxu0
        %v1361 = vadd.f32 %v1309, %v1360
        %v1362 = vpop.f32.mrb[0].mxu0
        %v1363 = vpop.f32.mrb[0].mxu0
        %v1364 = vpop.f32.mrb[0].mxu0
        %1365 = vdwg.mxu0
        %v1366 = vadd.f32 %v1361, %v1294
        %1367 = vst.msk [vmem:[%s735] sm:$0xff] %vm1076, %v1366
        %s1368 = sand.u32 %s390, 1
        %s1369 = scalar_lea.sflag [#allocation5], %s1368
        %s1370 = sand.u32 %s390, 1
        %s1371 = smul.addr %s1370, 8
        %s1372 = scalar_lea.vmem [#allocation27], %s1371
        // Predicated region
        $region145: #{tpu_custom_call.1} parent=79 // pred_check
          %p1373 = pneg %p400
        $region146: #{tpu_custom_call.1} parent=79 // pred_check_branch
          %1375 = sbr.rel (%p1373) target = $region148
        $region147: #{tpu_custom_call.1} parent=79 // pred_region
          %s1377 = ssub.s32 128, 128
          %1378 = vsyncadd %s1369, %s1377
          %s1379 = sadd.s32 %s46, %s45
          %s1380 = smul.addr %s1379, 128
          %s1381 = scalar_lea.hbm %s15, %s1380
          %s1383 = sshll.u32 %s1372, 4
          %s1384 = int_to_ptr.vmem [resolvable:$true] %s1383
          %1386 = dma.vmem_to_hbm [thread:$0]  %s1384, 128, %s1381, %s1369
        $region148: #{tpu_custom_call.1} parent=79 // pred_fallthru
          _
      $region80: #{tpu_custom_call.1} parent=5 // pred_fallthru
        _
      %p1387 = scmp.le.s32.totalorder 2, %s36
      // Predicated region
      $region149: #{tpu_custom_call.1} parent=5 // pred_check
        %p1388 = pneg %p1387
      $region150: #{tpu_custom_call.1} parent=5 // pred_check_branch
        %1390 = sbr.rel (%p1388) target = $region152
      $region151: #{tpu_custom_call.1} parent=5 // pred_region
        %s1391 = ssub.s32 %s36, 2
        // Predicated region
        $region153: #{tpu_custom_call.1} parent=151 // pred_check
          %p1392 = pneg %p406
        $region154: #{tpu_custom_call.1} parent=151 // pred_check_branch
          %1394 = sbr.rel (%p1392) target = $region156
        $region155: #{tpu_custom_call.1} parent=151 // pred_region
          %s1395 = sand.u32 %s391, 1
          %s1396 = scalar_lea.sflag [#allocation5], %s1395
          %s1397 = sand.u32 %s391, 1
          %s1398 = smul.addr %s1397, 8
          %s1399 = scalar_lea.vmem [#allocation27], %s1398
          %1400 = dma.done %s1396, 128
        $region156: #{tpu_custom_call.1} parent=151 // pred_fallthru
          _
      $region152: #{tpu_custom_call.1} parent=5 // pred_fallthru
        _
    $region6: #{tpu_custom_call.1} parent=1 // loop_footer
      %s40 = sadd.s32 1, %s36
    $region7: #{tpu_custom_call.1} parent=1 // loop_footer_branch
      %35 = sbr.rel target = $region3
    $region8: #{tpu_custom_call.1} parent=1 // loop_exit
      _
    %1401 = vsyncpa [#allocation4], 1
    %s1402 = scalar_lea.sflag [#allocation4], 1
    %1403 = vsyncpa %s1402, 1
    %1404 = vsyncpa [#allocation7], 1
    %s1405 = scalar_lea.sflag [#allocation7], 1
    %1406 = vsyncpa %s1405, 1
    %1407 = vsyncpa [#allocation10], 1
    %1408 = vsyncpa [#allocation13], 1
    %1409 = vsyncpa [#allocation16], 1
    %1410 = vsyncpa [#allocation19], 1
    %1411 = vsyncpa [#allocation22], 1
    %1412 = vsyncpa [#allocation25], 1
    %1413 = vsyncpa [#allocation5], 1
    %s1414 = scalar_lea.sflag [#allocation5], 1
    %1415 = vsyncpa %s1414, 1

</llo_original>
